<compile_context>
chip_gen: v7x
topology: tpu7x:2x2x1
jax: 0.10.0
libtpu: 0.0.40
codegen_flags: <defaults>
</compile_context>

<pallas_src>
import jax
import jax.numpy as jnp
from jax import lax
from jax.experimental import pallas as pl
from jax.experimental.pallas import tpu as pltpu

MAX_LENGTH = 31
SOS_token = 0

# Small model dims consistent with the module's __init__
HIDDEN = 32        # hidden_size
EMBED = 16         # embedding_size
VOCAB = 64         # output_size
NUM_LAYERS = 3
NUM_DIR = 2        # bidirectional=True
BATCH = 2
ENC_SEQ = 8


def decoder_kernel(tab0_ref, wih_ref, whh_ref, b_ref, outw_ref, outb_ref,
                   h0_ref, c0_ref,
                   out_ref, hout_ref, cout_ref,
                   h_sc, c_sc, onehot_sc):
    """Runs the full 31-step greedy decode.

    Refs:
      tab0_ref: (V, 8H)   bf16   relu(embedding) @ fused layer-0 input weights
      wih_ref:  (2, 2H, 8H) bf16 layers 1..2 fused (both-direction) input weights
      whh_ref:  (3, 2H, 8H) bf16 block-diagonal recurrent weights per layer
      b_ref:    (3, 1, 8H) f32   fused (b_ih + b_hh) biases per layer
      outw_ref: (2H, V) bf16, outb_ref: (1, V) f32   output projection
      h0_ref, c0_ref: (3B, 2H) f32   packed initial state (row l*B+b = [fwd | bwd])
      out_ref:  (T, B, V) f32        log-softmax logits, time-major
      hout_ref, cout_ref: (3B, 2H)   packed final state
      h_sc, c_sc: VMEM (3B, 2H) f32  running state
      onehot_sc:  VMEM (B, V) bf16   one-hot of current input token
    """
    B, V = onehot_sc.shape
    H = HIDDEN
    H2 = 2 * H

    # ---- init running state ----
    h_sc[...] = h0_ref[...]
    c_sc[...] = c0_ref[...]

    # ---- hoisted loop invariants (small values only; see header comment) ----
    iota = lax.broadcasted_iota(jnp.int32, (B, V), 1)
    b_l = [b_ref[l] for l in range(NUM_LAYERS)]      # each (1, 8H)
    outb = outb_ref[...]                              # (1, V)

    onehot_sc[...] = jnp.where(iota == SOS_token, 1.0, 0.0).astype(onehot_sc.dtype)

    def fused_cell(xgates, l, whh):
        """Both directions of layer `l` in one fused LSTM cell step.

        Gate column order is [i0,i1 | f0,f1 | o0,o1 | g0,g1] so sigmoid / tanh each
        apply to a single contiguous slice and the elementwise update acts on the
        direction-concatenated (B, 2H) state.
        """
        h = h_sc[pl.ds(l * B, B), :]                  # (B, 2H) f32
        c = c_sc[pl.ds(l * B, B), :]
        gates = (xgates
                 + jnp.dot(h.astype(jnp.bfloat16), whh,
                           preferred_element_type=jnp.float32)
                 + b_l[l])                            # (B, 8H) f32
        sig = jax.nn.sigmoid(gates[:, 0:3 * H2])
        g = jnp.tanh(gates[:, 3 * H2:4 * H2])
        i = sig[:, 0:H2]
        f = sig[:, H2:2 * H2]
        o = sig[:, 2 * H2:3 * H2]
        c_new = f * c + i * g
        h_new = o * jnp.tanh(c_new)                   # (B, 2H) = [fwd | bwd]
        h_sc[pl.ds(l * B, B), :] = h_new
        c_sc[pl.ds(l * B, B), :] = c_new
        return h_new

    @pl.loop(0, MAX_LENGTH)
    def _(t):
        onehot = onehot_sc[...]                                            # (B, V) bf16

        # embedding + ReLU + layer-0 x-path: one dot against the folded table
        xg = jnp.dot(onehot, tab0_ref[...], preferred_element_type=jnp.float32)
        x = fused_cell(xg, 0, whh_ref[0])                                  # (B, 2H)
        for l in range(1, NUM_LAYERS):
            xg = jnp.dot(x.astype(jnp.bfloat16), wih_ref[l - 1],
                         preferred_element_type=jnp.float32)
            x = fused_cell(xg, l, whh_ref[l])

        # output projection
        logits = (jnp.dot(x.astype(jnp.bfloat16), outw_ref[...],
                          preferred_element_type=jnp.float32) + outb)      # (B, V)
        out_ref[pl.ds(t, 1)] = logits[None, :, :]

        # greedy argmax feedback (first index of the max, matching torch.topk(1))
        max_val = jnp.max(logits, axis=-1, keepdims=True)
        tok = jnp.min(jnp.where(logits == max_val, iota, V),
                      axis=-1, keepdims=True)                              # (B, 1)
        onehot_sc[...] = jnp.where(iota == tok, 1.0, 0.0).astype(onehot_sc.dtype)

    # final hidden state (packed)
    hout_ref[...] = h_sc[...]
    cout_ref[...] = c_sc[...]

    # log_softmax over the vocab dim (matches F.log_softmax(..., dim=-1))
    xall = out_ref[...]
    m = jnp.max(xall, axis=-1, keepdims=True)
    lse = jnp.log(jnp.sum(jnp.exp(xall - m), axis=-1, keepdims=True))
    out_ref[...] = xall - m - lse


# ---------------------------------------------------------------------------
# Parameter generation (PyTorch layout) and one-time packing into kernel layout
# ---------------------------------------------------------------------------

def init_params(key):
    """PyTorch-layout parameters (as DecoderRNN would hold them)."""
    ks = jax.random.split(key, 8)
    s = 0.1
    H = HIDDEN
    emb = jax.random.normal(ks[0], (VOCAB, EMBED), jnp.float32) * s
    # nn.LSTM: weight_ih_l{l}[_reverse]: (4H, in), rows in gate order [i, f, g, o]
    w_ih0 = jax.random.normal(ks[1], (NUM_DIR, 4 * H, EMBED), jnp.float32) * s
    w_ihr = jax.random.normal(ks[2], (NUM_LAYERS - 1, NUM_DIR, 4 * H, 2 * H),
                              jnp.float32) * s
    w_hh = jax.random.normal(ks[3], (NUM_LAYERS, NUM_DIR, 4 * H, H), jnp.float32) * s
    b_ih = jax.random.normal(ks[4], (NUM_LAYERS, NUM_DIR, 4 * H), jnp.float32) * s
    b_hh = jax.random.normal(ks[5], (NUM_LAYERS, NUM_DIR, 4 * H), jnp.float32) * s
    out_w = jax.random.normal(ks[6], (VOCAB, 2 * H), jnp.float32) * s
    out_b = jax.random.normal(ks[7], (VOCAB,), jnp.float32) * s
    return dict(emb=emb, w_ih0=w_ih0, w_ihr=w_ihr, w_hh=w_hh,
                b_ih=b_ih, b_hh=b_hh, out_w=out_w, out_b=out_b)


def _fuse_cols(w0_t, w1_t):
    # per-direction (in, 4H) cols [i,f,g,o] -> (in, 8H) cols [i0,i1,f0,f1,o0,o1,g0,g1]
    H = HIDDEN
    return jnp.concatenate([
        w0_t[:, 0:H],         w1_t[:, 0:H],
        w0_t[:, H:2 * H],     w1_t[:, H:2 * H],
        w0_t[:, 3 * H:4 * H], w1_t[:, 3 * H:4 * H],
        w0_t[:, 2 * H:3 * H], w1_t[:, 2 * H:3 * H],
    ], axis=1)


def _fuse_hh(w0_t, w1_t):
    # block-diagonal (2H, 8H): [h_fwd | h_bwd] @ bd == per-direction h-path gates
    H = HIDDEN
    Z = jnp.zeros((H, H), w0_t.dtype)
    top = jnp.concatenate([w0_t[:, 0:H], Z, w0_t[:, H:2 * H], Z,
                           w0_t[:, 3 * H:4 * H], Z, w0_t[:, 2 * H:3 * H], Z], axis=1)
    bot = jnp.concatenate([Z, w1_t[:, 0:H], Z, w1_t[:, H:2 * H],
                           Z, w1_t[:, 3 * H:4 * H], Z, w1_t[:, 2 * H:3 * H]], axis=1)
    return jnp.concatenate([top, bot], axis=0)


def _fuse_bias(b0, b1):
    H = HIDDEN
    return jnp.concatenate([b0[0:H], b1[0:H], b0[H:2 * H], b1[H:2 * H],
                            b0[3 * H:4 * H], b1[3 * H:4 * H],
                            b0[2 * H:3 * H], b1[2 * H:3 * H]])


def pack_params(p):
    """One-time pre-transform of PyTorch-layout weights into the fused kernel layout."""
    # Layer 0: fold embedding + ReLU + both directions' input projections.
    # Valid because the one-hot selects a single row: relu(onehot@E)@W == onehot@(relu(E)@W).
    wih0_fused = _fuse_cols(p['w_ih0'][0].T, p['w_ih0'][1].T)               # (E, 8H)
    tab0 = jnp.dot(jnp.maximum(p['emb'], 0.0), wih0_fused)                  # (V, 8H)
    wih = jnp.stack([_fuse_cols(p['w_ihr'][l, 0].T, p['w_ihr'][l, 1].T)
                     for l in range(NUM_LAYERS - 1)])                       # (2, 2H, 8H)
    whh = jnp.stack([_fuse_hh(p['w_hh'][l, 0].T, p['w_hh'][l, 1].T)
                     for l in range(NUM_LAYERS)])                           # (3, 2H, 8H)
    bias = jnp.stack([_fuse_bias(p['b_ih'][l, 0] + p['b_hh'][l, 0],
                                 p['b_ih'][l, 1] + p['b_hh'][l, 1])
                      for l in range(NUM_LAYERS)])[:, None, :]              # (3, 1, 8H)
    return dict(
        tab0=tab0.astype(jnp.bfloat16),
        wih=wih.astype(jnp.bfloat16),
        whh=whh.astype(jnp.bfloat16),
        bias=bias.astype(jnp.float32),
        outw=p['out_w'].T.astype(jnp.bfloat16),                             # (2H, V)
        outb=p['out_b'].reshape(1, VOCAB).astype(jnp.float32),
    )


def _pack_state(x, batch):
    # (L*2, B, H) -> (L*B, 2H); row l*B+b = [dir0 | dir1]
    return (x.reshape(NUM_LAYERS, NUM_DIR, batch, HIDDEN)
             .transpose(0, 2, 1, 3)
             .reshape(NUM_LAYERS * batch, NUM_DIR * HIDDEN))


def _unpack_state(x, batch):
    # (L*B, 2H) -> (L*2, B, H)
    return (x.reshape(NUM_LAYERS, batch, NUM_DIR, HIDDEN)
             .transpose(0, 2, 1, 3)
             .reshape(NUM_LAYERS * NUM_DIR, batch, HIDDEN))


def decoder_forward(packed, encoder_outputs, encoder_hidden):
    """Mirrors DecoderRNN.forward(encoder_outputs, encoder_hidden, target_tensor=None)."""
    batch = encoder_outputs.shape[0]
    h0, c0 = encoder_hidden  # each (NUM_LAYERS * NUM_DIR, B, H)
    h0p = _pack_state(h0, batch)
    c0p = _pack_state(c0, batch)

    vmem = pl.BlockSpec(memory_space=pltpu.MemorySpace.VMEM)
    out_shapes = (
        jax.ShapeDtypeStruct((MAX_LENGTH, batch, VOCAB), jnp.float32),
        jax.ShapeDtypeStruct((NUM_LAYERS * batch, NUM_DIR * HIDDEN), jnp.float32),
        jax.ShapeDtypeStruct((NUM_LAYERS * batch, NUM_DIR * HIDDEN), jnp.float32),
    )
    logp_tbv, h_n_p, c_n_p = pl.pallas_call(
        decoder_kernel,
        out_shape=out_shapes,
        in_specs=[vmem] * 8,
        out_specs=(vmem, vmem, vmem),
        scratch_shapes=[
            pltpu.VMEM((NUM_LAYERS * batch, NUM_DIR * HIDDEN), jnp.float32),  # h state
            pltpu.VMEM((NUM_LAYERS * batch, NUM_DIR * HIDDEN), jnp.float32),  # c state
            pltpu.VMEM((batch, VOCAB), jnp.bfloat16),                         # one-hot tok
        ],
    )(packed['tab0'], packed['wih'], packed['whh'], packed['bias'],
      packed['outw'], packed['outb'], h0p, c0p)

    decoder_outputs = jnp.transpose(logp_tbv, (1, 0, 2))   # (B, MAX_LENGTH, V)
    h_n = _unpack_state(h_n_p, batch)
    c_n = _unpack_state(c_n_p, batch)
    return decoder_outputs, (h_n, c_n), None


if __name__ == "__main__":
    key = jax.random.PRNGKey(0)
    pkey, dkey = jax.random.split(key)
    params = init_params(pkey)
    packed = pack_params(params)

    k1, k2, k3 = jax.random.split(dkey, 3)
    # encoder_outputs only supplies the batch size in the reference module
    encoder_outputs = jax.random.normal(k1, (BATCH, ENC_SEQ, 2 * HIDDEN), jnp.float32)
    h0 = jax.random.normal(k2, (NUM_LAYERS * NUM_DIR, BATCH, HIDDEN), jnp.float32)
    c0 = jax.random.normal(k3, (NUM_LAYERS * NUM_DIR, BATCH, HIDDEN), jnp.float32)

    dec_out, (h_n, c_n), attn = decoder_forward(packed, encoder_outputs, (h0, c0))
    jax.block_until_ready((dec_out, h_n, c_n))

    assert dec_out.shape == (BATCH, MAX_LENGTH, VOCAB)
    assert h_n.shape == (NUM_LAYERS * NUM_DIR, BATCH, HIDDEN)
    assert c_n.shape == (NUM_LAYERS * NUM_DIR, BATCH, HIDDEN)
    assert attn is None
    # log_softmax sanity: exp of outputs sums to 1 along the vocab dim
    probs_sum = jnp.exp(dec_out).sum(-1)
    assert bool(jnp.all(jnp.abs(probs_sum - 1.0) < 1e-3))

    print("KERNEL_OK")
</pallas_src>

<mosaic_0001>
module attributes {stable_mosaic.version = 11 : i64} {
  func.func @decoder_kernel(%arg0: memref<64x256xbf16, #tpu.memory_space<vmem>>, %arg1: memref<2x64x256xbf16, #tpu.memory_space<vmem>>, %arg2: memref<3x64x256xbf16, #tpu.memory_space<vmem>>, %arg3: memref<3x1x256xf32, #tpu.memory_space<vmem>>, %arg4: memref<64x64xbf16, #tpu.memory_space<vmem>>, %arg5: memref<1x64xf32, #tpu.memory_space<vmem>>, %arg6: memref<6x64xf32, #tpu.memory_space<vmem>>, %arg7: memref<6x64xf32, #tpu.memory_space<vmem>>, %arg8: memref<31x2x64xf32, #tpu.memory_space<vmem>>, %arg9: memref<6x64xf32, #tpu.memory_space<vmem>>, %arg10: memref<6x64xf32, #tpu.memory_space<vmem>>, %arg11: memref<6x64xf32, #tpu.memory_space<vmem>>, %arg12: memref<6x64xf32, #tpu.memory_space<vmem>>, %arg13: memref<2x64xbf16, #tpu.memory_space<vmem>>) attributes {dimension_semantics = [], scalar_prefetch = 0 : i64, scratch_operands = 3 : i64, tpu.core_type = #tpu.core_type<tc>} {
    %c0 = arith.constant 0 : index
    %c0_0 = arith.constant 0 : index
    %0 = vector.load %arg6[%c0, %c0_0] : memref<6x64xf32, #tpu.memory_space<vmem>>, vector<6x64xf32>
    %c0_1 = arith.constant 0 : index
    %c0_2 = arith.constant 0 : index
    %1 = vector.load %arg11[%c0_1, %c0_2] : memref<6x64xf32, #tpu.memory_space<vmem>>, vector<6x64xf32>
    tpu.vector_store %arg11[%c0_1, %c0_2], %0 {strides = array<i32>} : memref<6x64xf32, #tpu.memory_space<vmem>>, vector<6x64xf32>,
    %c0_3 = arith.constant 0 : index
    %c0_4 = arith.constant 0 : index
    %2 = vector.load %arg7[%c0_3, %c0_4] : memref<6x64xf32, #tpu.memory_space<vmem>>, vector<6x64xf32>
    %c0_5 = arith.constant 0 : index
    %c0_6 = arith.constant 0 : index
    %3 = vector.load %arg12[%c0_5, %c0_6] : memref<6x64xf32, #tpu.memory_space<vmem>>, vector<6x64xf32>
    tpu.vector_store %arg12[%c0_5, %c0_6], %2 {strides = array<i32>} : memref<6x64xf32, #tpu.memory_space<vmem>>, vector<6x64xf32>,
    %4 = tpu.iota {dimensions = array<i32: 1>} : vector<2x64xi32>
    %c0_7 = arith.constant 0 : index
    %c0_8 = arith.constant 0 : index
    %c0_9 = arith.constant 0 : index
    %5 = vector.load %arg3[%c0_7, %c0_8, %c0_9] : memref<3x1x256xf32, #tpu.memory_space<vmem>>, vector<1x1x256xf32>
    %6 = vector.shape_cast %5 : vector<1x1x256xf32> to vector<1x256xf32>
    %c1 = arith.constant 1 : index
    %c0_10 = arith.constant 0 : index
    %c0_11 = arith.constant 0 : index
    %7 = vector.load %arg3[%c1, %c0_10, %c0_11] : memref<3x1x256xf32, #tpu.memory_space<vmem>>, vector<1x1x256xf32>
    %8 = vector.shape_cast %7 : vector<1x1x256xf32> to vector<1x256xf32>
    %c2 = arith.constant 2 : index
    %c0_12 = arith.constant 0 : index
    %c0_13 = arith.constant 0 : index
    %9 = vector.load %arg3[%c2, %c0_12, %c0_13] : memref<3x1x256xf32, #tpu.memory_space<vmem>>, vector<1x1x256xf32>
    %10 = vector.shape_cast %9 : vector<1x1x256xf32> to vector<1x256xf32>
    %c0_14 = arith.constant 0 : index
    %c0_15 = arith.constant 0 : index
    %11 = vector.load %arg5[%c0_14, %c0_15] : memref<1x64xf32, #tpu.memory_space<vmem>>, vector<1x64xf32>
    %c0_i32 = arith.constant 0 : i32
    %12 = vector.broadcast %c0_i32 : i32 to vector<2x64xi32>
    %13 = arith.cmpi eq, %4, %12 : vector<2x64xi32>
    %cst = arith.constant 1.000000e+00 : f32
    %cst_16 = arith.constant 0.000000e+00 : f32
    %14 = vector.broadcast %cst : f32 to vector<2x64xf32>
    %15 = vector.broadcast %cst_16 : f32 to vector<2x64xf32>
    %16 = arith.select %13, %14, %15 : vector<2x64xi1>, vector<2x64xf32>
    %17 = arith.truncf %16 : vector<2x64xf32> to vector<2x64xbf16>
    %c0_17 = arith.constant 0 : index
    %c0_18 = arith.constant 0 : index
    %18 = vector.load %arg13[%c0_17, %c0_18] : memref<2x64xbf16, #tpu.memory_space<vmem>>, vector<2x64xbf16>
    tpu.vector_store %arg13[%c0_17, %c0_18], %17 {strides = array<i32>} : memref<2x64xbf16, #tpu.memory_space<vmem>>, vector<2x64xbf16>,
    %c0_i32_19 = arith.constant 0 : i32
    %c31_i32 = arith.constant 31 : i32
    %19 = arith.addi %c0_i32_19, %c31_i32 : i32
    %c1_i32 = arith.constant 1 : i32
    scf.for %arg14 = %c0_i32_19 to %19 step %c1_i32  : i32 {
      %c1_i32_37 = arith.constant 1 : i32
      %38 = arith.muli %arg14, %c1_i32_37 : i32
      %c0_i32_38 = arith.constant 0 : i32
      %39 = arith.addi %c0_i32_38, %38 : i32
      %c0_39 = arith.constant 0 : index
      %c0_40 = arith.constant 0 : index
      %40 = vector.load %arg13[%c0_39, %c0_40] : memref<2x64xbf16, #tpu.memory_space<vmem>>, vector<2x64xbf16>
      %c0_41 = arith.constant 0 : index
      %c0_42 = arith.constant 0 : index
      %41 = vector.load %arg0[%c0_41, %c0_42] : memref<64x256xbf16, #tpu.memory_space<vmem>>, vector<64x256xbf16>
      %cst_43 = arith.constant dense<0.000000e+00> : vector<2x256xf32>
      %42 = tpu.matmul %40, %41, %cst_43 {dimension_numbers = #tpu.dot_dimension_numbers<[1], [0], [0], [1], [0, 0, 1, 1], [], []>} : vector<2x64xbf16>, vector<64x256xbf16>, vector<2x256xf32> -> vector<2x256xf32>
      %c0_44 = arith.constant 0 : index
      %c0_45 = arith.constant 0 : index
      %c0_46 = arith.constant 0 : index
      %43 = vector.load %arg2[%c0_44, %c0_45, %c0_46] : memref<3x64x256xbf16, #tpu.memory_space<vmem>>, vector<1x64x256xbf16>
      %44 = vector.shape_cast %43 : vector<1x64x256xbf16> to vector<64x256xbf16>
      %c0_47 = arith.constant 0 : index
      %c0_48 = arith.constant 0 : index
      %45 = vector.load %arg11[%c0_47, %c0_48] : memref<6x64xf32, #tpu.memory_space<vmem>>, vector<2x64xf32>
      %c0_49 = arith.constant 0 : index
      %c0_50 = arith.constant 0 : index
      %46 = vector.load %arg12[%c0_49, %c0_50] : memref<6x64xf32, #tpu.memory_space<vmem>>, vector<2x64xf32>
      %47 = arith.truncf %45 : vector<2x64xf32> to vector<2x64xbf16>
      %cst_51 = arith.constant dense<0.000000e+00> : vector<2x256xf32>
      %48 = tpu.matmul %47, %44, %cst_51 {dimension_numbers = #tpu.dot_dimension_numbers<[1], [0], [0], [1], [0, 0, 1, 1], [], []>} : vector<2x64xbf16>, vector<64x256xbf16>, vector<2x256xf32> -> vector<2x256xf32>
      %49 = arith.addf %42, %48 : vector<2x256xf32>
      %50 = vector.broadcast %6 : vector<1x256xf32> to vector<2x256xf32>
      %51 = arith.addf %49, %50 : vector<2x256xf32>
      %52 = vector.extract_strided_slice %51 {offsets = [0, 0], sizes = [2, 192], strides = [1, 1]} : vector<2x256xf32> to vector<2x192xf32>
      %53 = arith.negf %52 : vector<2x192xf32>
      %54 = math.exp %53 : vector<2x192xf32>
      %cst_52 = arith.constant 1.000000e+00 : f32
      %55 = vector.broadcast %cst_52 : f32 to vector<2x192xf32>
      %56 = arith.addf %55, %54 : vector<2x192xf32>
      %57 = arith.divf %55, %56 : vector<2x192xf32>
      %58 = vector.extract_strided_slice %51 {offsets = [0, 192], sizes = [2, 64], strides = [1, 1]} : vector<2x256xf32> to vector<2x64xf32>
      %59 = math.tanh %58 : vector<2x64xf32>
      %60 = vector.extract_strided_slice %57 {offsets = [0, 0], sizes = [2, 64], strides = [1, 1]} : vector<2x192xf32> to vector<2x64xf32>
      %61 = vector.extract_strided_slice %57 {offsets = [0, 64], sizes = [2, 64], strides = [1, 1]} : vector<2x192xf32> to vector<2x64xf32>
      %62 = vector.extract_strided_slice %57 {offsets = [0, 128], sizes = [2, 64], strides = [1, 1]} : vector<2x192xf32> to vector<2x64xf32>
      %63 = arith.mulf %61, %46 : vector<2x64xf32>
      %64 = arith.mulf %60, %59 : vector<2x64xf32>
      %65 = arith.addf %63, %64 : vector<2x64xf32>
      %66 = math.tanh %65 : vector<2x64xf32>
      %67 = arith.mulf %62, %66 : vector<2x64xf32>
      %c0_53 = arith.constant 0 : index
      %c0_54 = arith.constant 0 : index
      %68 = vector.load %arg11[%c0_53, %c0_54] : memref<6x64xf32, #tpu.memory_space<vmem>>, vector<2x64xf32>
      tpu.vector_store %arg11[%c0_53, %c0_54], %67 {strides = array<i32>} : memref<6x64xf32, #tpu.memory_space<vmem>>, vector<2x64xf32>,
      %c0_55 = arith.constant 0 : index
      %c0_56 = arith.constant 0 : index
      %69 = vector.load %arg12[%c0_55, %c0_56] : memref<6x64xf32, #tpu.memory_space<vmem>>, vector<2x64xf32>
      tpu.vector_store %arg12[%c0_55, %c0_56], %65 {strides = array<i32>} : memref<6x64xf32, #tpu.memory_space<vmem>>, vector<2x64xf32>,
      %70 = arith.truncf %67 : vector<2x64xf32> to vector<2x64xbf16>
      %c0_57 = arith.constant 0 : index
      %c0_58 = arith.constant 0 : index
      %c0_59 = arith.constant 0 : index
      %71 = vector.load %arg1[%c0_57, %c0_58, %c0_59] : memref<2x64x256xbf16, #tpu.memory_space<vmem>>, vector<1x64x256xbf16>
      %72 = vector.shape_cast %71 : vector<1x64x256xbf16> to vector<64x256xbf16>
      %cst_60 = arith.constant dense<0.000000e+00> : vector<2x256xf32>
      %73 = tpu.matmul %70, %72, %cst_60 {dimension_numbers = #tpu.dot_dimension_numbers<[1], [0], [0], [1], [0, 0, 1, 1], [], []>} : vector<2x64xbf16>, vector<64x256xbf16>, vector<2x256xf32> -> vector<2x256xf32>
      %c1_61 = arith.constant 1 : index
      %c0_62 = arith.constant 0 : index
      %c0_63 = arith.constant 0 : index
      %74 = vector.load %arg2[%c1_61, %c0_62, %c0_63] : memref<3x64x256xbf16, #tpu.memory_space<vmem>>, vector<1x64x256xbf16>
      %75 = vector.shape_cast %74 : vector<1x64x256xbf16> to vector<64x256xbf16>
      %c2_64 = arith.constant 2 : index
      %c0_65 = arith.constant 0 : index
      %76 = vector.load %arg11[%c2_64, %c0_65] : memref<6x64xf32, #tpu.memory_space<vmem>>, vector<2x64xf32>
      %c2_66 = arith.constant 2 : index
      %c0_67 = arith.constant 0 : index
      %77 = vector.load %arg12[%c2_66, %c0_67] : memref<6x64xf32, #tpu.memory_space<vmem>>, vector<2x64xf32>
      %78 = arith.truncf %76 : vector<2x64xf32> to vector<2x64xbf16>
      %cst_68 = arith.constant dense<0.000000e+00> : vector<2x256xf32>
      %79 = tpu.matmul %78, %75, %cst_68 {dimension_numbers = #tpu.dot_dimension_numbers<[1], [0], [0], [1], [0, 0, 1, 1], [], []>} : vector<2x64xbf16>, vector<64x256xbf16>, vector<2x256xf32> -> vector<2x256xf32>
      %80 = arith.addf %73, %79 : vector<2x256xf32>
      %81 = vector.broadcast %8 : vector<1x256xf32> to vector<2x256xf32>
      %82 = arith.addf %80, %81 : vector<2x256xf32>
      %83 = vector.extract_strided_slice %82 {offsets = [0, 0], sizes = [2, 192], strides = [1, 1]} : vector<2x256xf32> to vector<2x192xf32>
      %84 = arith.negf %83 : vector<2x192xf32>
      %85 = math.exp %84 : vector<2x192xf32>
      %cst_69 = arith.constant 1.000000e+00 : f32
      %86 = vector.broadcast %cst_69 : f32 to vector<2x192xf32>
      %87 = arith.addf %86, %85 : vector<2x192xf32>
      %88 = arith.divf %86, %87 : vector<2x192xf32>
      %89 = vector.extract_strided_slice %82 {offsets = [0, 192], sizes = [2, 64], strides = [1, 1]} : vector<2x256xf32> to vector<2x64xf32>
      %90 = math.tanh %89 : vector<2x64xf32>
      %91 = vector.extract_strided_slice %88 {offsets = [0, 0], sizes = [2, 64], strides = [1, 1]} : vector<2x192xf32> to vector<2x64xf32>
      %92 = vector.extract_strided_slice %88 {offsets = [0, 64], sizes = [2, 64], strides = [1, 1]} : vector<2x192xf32> to vector<2x64xf32>
      %93 = vector.extract_strided_slice %88 {offsets = [0, 128], sizes = [2, 64], strides = [1, 1]} : vector<2x192xf32> to vector<2x64xf32>
      %94 = arith.mulf %92, %77 : vector<2x64xf32>
      %95 = arith.mulf %91, %90 : vector<2x64xf32>
      %96 = arith.addf %94, %95 : vector<2x64xf32>
      %97 = math.tanh %96 : vector<2x64xf32>
      %98 = arith.mulf %93, %97 : vector<2x64xf32>
      %c2_70 = arith.constant 2 : index
      %c0_71 = arith.constant 0 : index
      %99 = vector.load %arg11[%c2_70, %c0_71] : memref<6x64xf32, #tpu.memory_space<vmem>>, vector<2x64xf32>
      tpu.vector_store %arg11[%c2_70, %c0_71], %98 {strides = array<i32>} : memref<6x64xf32, #tpu.memory_space<vmem>>, vector<2x64xf32>,
      %c2_72 = arith.constant 2 : index
      %c0_73 = arith.constant 0 : index
      %100 = vector.load %arg12[%c2_72, %c0_73] : memref<6x64xf32, #tpu.memory_space<vmem>>, vector<2x64xf32>
      tpu.vector_store %arg12[%c2_72, %c0_73], %96 {strides = array<i32>} : memref<6x64xf32, #tpu.memory_space<vmem>>, vector<2x64xf32>,
      %101 = arith.truncf %98 : vector<2x64xf32> to vector<2x64xbf16>
      %c1_74 = arith.constant 1 : index
      %c0_75 = arith.constant 0 : index
      %c0_76 = arith.constant 0 : index
      %102 = vector.load %arg1[%c1_74, %c0_75, %c0_76] : memref<2x64x256xbf16, #tpu.memory_space<vmem>>, vector<1x64x256xbf16>
      %103 = vector.shape_cast %102 : vector<1x64x256xbf16> to vector<64x256xbf16>
      %cst_77 = arith.constant dense<0.000000e+00> : vector<2x256xf32>
      %104 = tpu.matmul %101, %103, %cst_77 {dimension_numbers = #tpu.dot_dimension_numbers<[1], [0], [0], [1], [0, 0, 1, 1], [], []>} : vector<2x64xbf16>, vector<64x256xbf16>, vector<2x256xf32> -> vector<2x256xf32>
      %c2_78 = arith.constant 2 : index
      %c0_79 = arith.constant 0 : index
      %c0_80 = arith.constant 0 : index
      %105 = vector.load %arg2[%c2_78, %c0_79, %c0_80] : memref<3x64x256xbf16, #tpu.memory_space<vmem>>, vector<1x64x256xbf16>
      %106 = vector.shape_cast %105 : vector<1x64x256xbf16> to vector<64x256xbf16>
      %c4 = arith.constant 4 : index
      %c0_81 = arith.constant 0 : index
      %107 = vector.load %arg11[%c4, %c0_81] : memref<6x64xf32, #tpu.memory_space<vmem>>, vector<2x64xf32>
      %c4_82 = arith.constant 4 : index
      %c0_83 = arith.constant 0 : index
      %108 = vector.load %arg12[%c4_82, %c0_83] : memref<6x64xf32, #tpu.memory_space<vmem>>, vector<2x64xf32>
      %109 = arith.truncf %107 : vector<2x64xf32> to vector<2x64xbf16>
      %cst_84 = arith.constant dense<0.000000e+00> : vector<2x256xf32>
      %110 = tpu.matmul %109, %106, %cst_84 {dimension_numbers = #tpu.dot_dimension_numbers<[1], [0], [0], [1], [0, 0, 1, 1], [], []>} : vector<2x64xbf16>, vector<64x256xbf16>, vector<2x256xf32> -> vector<2x256xf32>
      %111 = arith.addf %104, %110 : vector<2x256xf32>
      %112 = vector.broadcast %10 : vector<1x256xf32> to vector<2x256xf32>
      %113 = arith.addf %111, %112 : vector<2x256xf32>
      %114 = vector.extract_strided_slice %113 {offsets = [0, 0], sizes = [2, 192], strides = [1, 1]} : vector<2x256xf32> to vector<2x192xf32>
      %115 = arith.negf %114 : vector<2x192xf32>
      %116 = math.exp %115 : vector<2x192xf32>
      %cst_85 = arith.constant 1.000000e+00 : f32
      %117 = vector.broadcast %cst_85 : f32 to vector<2x192xf32>
      %118 = arith.addf %117, %116 : vector<2x192xf32>
      %119 = arith.divf %117, %118 : vector<2x192xf32>
      %120 = vector.extract_strided_slice %113 {offsets = [0, 192], sizes = [2, 64], strides = [1, 1]} : vector<2x256xf32> to vector<2x64xf32>
      %121 = math.tanh %120 : vector<2x64xf32>
      %122 = vector.extract_strided_slice %119 {offsets = [0, 0], sizes = [2, 64], strides = [1, 1]} : vector<2x192xf32> to vector<2x64xf32>
      %123 = vector.extract_strided_slice %119 {offsets = [0, 64], sizes = [2, 64], strides = [1, 1]} : vector<2x192xf32> to vector<2x64xf32>
      %124 = vector.extract_strided_slice %119 {offsets = [0, 128], sizes = [2, 64], strides = [1, 1]} : vector<2x192xf32> to vector<2x64xf32>
      %125 = arith.mulf %123, %108 : vector<2x64xf32>
      %126 = arith.mulf %122, %121 : vector<2x64xf32>
      %127 = arith.addf %125, %126 : vector<2x64xf32>
      %128 = math.tanh %127 : vector<2x64xf32>
      %129 = arith.mulf %124, %128 : vector<2x64xf32>
      %c4_86 = arith.constant 4 : index
      %c0_87 = arith.constant 0 : index
      %130 = vector.load %arg11[%c4_86, %c0_87] : memref<6x64xf32, #tpu.memory_space<vmem>>, vector<2x64xf32>
      tpu.vector_store %arg11[%c4_86, %c0_87], %129 {strides = array<i32>} : memref<6x64xf32, #tpu.memory_space<vmem>>, vector<2x64xf32>,
      %c4_88 = arith.constant 4 : index
      %c0_89 = arith.constant 0 : index
      %131 = vector.load %arg12[%c4_88, %c0_89] : memref<6x64xf32, #tpu.memory_space<vmem>>, vector<2x64xf32>
      tpu.vector_store %arg12[%c4_88, %c0_89], %127 {strides = array<i32>} : memref<6x64xf32, #tpu.memory_space<vmem>>, vector<2x64xf32>,
      %132 = arith.truncf %129 : vector<2x64xf32> to vector<2x64xbf16>
      %c0_90 = arith.constant 0 : index
      %c0_91 = arith.constant 0 : index
      %133 = vector.load %arg4[%c0_90, %c0_91] : memref<64x64xbf16, #tpu.memory_space<vmem>>, vector<64x64xbf16>
      %cst_92 = arith.constant dense<0.000000e+00> : vector<2x64xf32>
      %134 = tpu.matmul %132, %133, %cst_92 {dimension_numbers = #tpu.dot_dimension_numbers<[1], [0], [0], [1], [0, 0, 1, 1], [], []>} : vector<2x64xbf16>, vector<64x64xbf16>, vector<2x64xf32> -> vector<2x64xf32>
      %135 = vector.broadcast %11 : vector<1x64xf32> to vector<2x64xf32>
      %136 = arith.addf %134, %135 : vector<2x64xf32>
      %137 = vector.shape_cast %136 : vector<2x64xf32> to vector<1x2x64xf32>
      %138 = arith.index_cast %39 : i32 to index
      %c0_93 = arith.constant 0 : index
      %c0_94 = arith.constant 0 : index
      %139 = vector.load %arg8[%138, %c0_93, %c0_94] : memref<31x2x64xf32, #tpu.memory_space<vmem>>, vector<1x2x64xf32>
      tpu.vector_store %arg8[%138, %c0_93, %c0_94], %137 {strides = array<i32>} : memref<31x2x64xf32, #tpu.memory_space<vmem>>, vector<1x2x64xf32>,
      %cst_95 = arith.constant dense<0xFF800000> : vector<2xf32>
      %140 = vector.multi_reduction <maximumf>, %136, %cst_95 [1] : vector<2x64xf32> to vector<2xf32>
      %141 = vector.shape_cast %140 : vector<2xf32> to vector<2x1xf32>
      %142 = vector.broadcast %141 : vector<2x1xf32> to vector<2x64xf32>
      %143 = arith.cmpf oeq, %136, %142 : vector<2x64xf32>
      %c64_i32 = arith.constant 64 : i32
      %144 = vector.broadcast %c64_i32 : i32 to vector<2x64xi32>
      %145 = arith.select %143, %4, %144 : vector<2x64xi1>, vector<2x64xi32>
      %cst_96 = arith.constant dense<2147483647> : vector<2xi32>
      %146 = vector.multi_reduction <minsi>, %145, %cst_96 [1] : vector<2x64xi32> to vector<2xi32>
      %147 = vector.shape_cast %146 : vector<2xi32> to vector<2x1xi32>
      %148 = vector.broadcast %147 : vector<2x1xi32> to vector<2x64xi32>
      %149 = arith.cmpi eq, %4, %148 : vector<2x64xi32>
      %cst_97 = arith.constant 1.000000e+00 : f32
      %cst_98 = arith.constant 0.000000e+00 : f32
      %150 = vector.broadcast %cst_97 : f32 to vector<2x64xf32>
      %151 = vector.broadcast %cst_98 : f32 to vector<2x64xf32>
      %152 = arith.select %149, %150, %151 : vector<2x64xi1>, vector<2x64xf32>
      %153 = arith.truncf %152 : vector<2x64xf32> to vector<2x64xbf16>
      %c0_99 = arith.constant 0 : index
      %c0_100 = arith.constant 0 : index
      %154 = vector.load %arg13[%c0_99, %c0_100] : memref<2x64xbf16, #tpu.memory_space<vmem>>, vector<2x64xbf16>
      tpu.vector_store %arg13[%c0_99, %c0_100], %153 {strides = array<i32>} : memref<2x64xbf16, #tpu.memory_space<vmem>>, vector<2x64xbf16>,
    }
    %c31_i32_20 = arith.constant 31 : i32
    %c0_21 = arith.constant 0 : index
    %c0_22 = arith.constant 0 : index
    %20 = vector.load %arg11[%c0_21, %c0_22] : memref<6x64xf32, #tpu.memory_space<vmem>>, vector<6x64xf32>
    %c0_23 = arith.constant 0 : index
    %c0_24 = arith.constant 0 : index
    %21 = vector.load %arg9[%c0_23, %c0_24] : memref<6x64xf32, #tpu.memory_space<vmem>>, vector<6x64xf32>
    tpu.vector_store %arg9[%c0_23, %c0_24], %20 {strides = array<i32>} : memref<6x64xf32, #tpu.memory_space<vmem>>, vector<6x64xf32>,
    %c0_25 = arith.constant 0 : index
    %c0_26 = arith.constant 0 : index
    %22 = vector.load %arg12[%c0_25, %c0_26] : memref<6x64xf32, #tpu.memory_space<vmem>>, vector<6x64xf32>
    %c0_27 = arith.constant 0 : index
    %c0_28 = arith.constant 0 : index
    %23 = vector.load %arg10[%c0_27, %c0_28] : memref<6x64xf32, #tpu.memory_space<vmem>>, vector<6x64xf32>
    tpu.vector_store %arg10[%c0_27, %c0_28], %22 {strides = array<i32>} : memref<6x64xf32, #tpu.memory_space<vmem>>, vector<6x64xf32>,
    %c0_29 = arith.constant 0 : index
    %c0_30 = arith.constant 0 : index
    %c0_31 = arith.constant 0 : index
    %24 = vector.load %arg8[%c0_29, %c0_30, %c0_31] : memref<31x2x64xf32, #tpu.memory_space<vmem>>, vector<31x2x64xf32>
    %cst_32 = arith.constant dense<0xFF800000> : vector<31x2xf32>
    %25 = vector.multi_reduction <maximumf>, %24, %cst_32 [2] : vector<31x2x64xf32> to vector<31x2xf32>
    %26 = vector.shape_cast %25 : vector<31x2xf32> to vector<31x2x1xf32>
    %27 = vector.broadcast %26 : vector<31x2x1xf32> to vector<31x2x64xf32>
    %28 = arith.subf %24, %27 : vector<31x2x64xf32>
    %29 = math.exp %28 : vector<31x2x64xf32>
    %cst_33 = arith.constant dense<0.000000e+00> : vector<31x2xf32>
    %30 = vector.multi_reduction <add>, %29, %cst_33 [2] : vector<31x2x64xf32> to vector<31x2xf32>
    %31 = vector.shape_cast %30 : vector<31x2xf32> to vector<31x2x1xf32>
    %32 = math.log %31 : vector<31x2x1xf32>
    %33 = vector.broadcast %26 : vector<31x2x1xf32> to vector<31x2x64xf32>
    %34 = arith.subf %24, %33 : vector<31x2x64xf32>
    %35 = vector.broadcast %32 : vector<31x2x1xf32> to vector<31x2x64xf32>
    %36 = arith.subf %34, %35 : vector<31x2x64xf32>
    %c0_34 = arith.constant 0 : index
    %c0_35 = arith.constant 0 : index
    %c0_36 = arith.constant 0 : index
    %37 = vector.load %arg8[%c0_34, %c0_35, %c0_36] : memref<31x2x64xf32, #tpu.memory_space<vmem>>, vector<31x2x64xf32>
    tpu.vector_store %arg8[%c0_34, %c0_35, %c0_36], %36 {strides = array<i32>} : memref<31x2x64xf32, #tpu.memory_space<vmem>>, vector<31x2x64xf32>,
    return
  }
}

</mosaic_0001>

<llo_original>
// kernel: tpu_custom_call.1
$region0: #{tpu_custom_call.1}
  #allocation0 [shape = 'u32[]', space=smem, size = 0x4, offset = 0x4, fixed_abs, tag = 'smem constant byte address 0x4 - core index']
  #allocation1 [shape = 'u32[144,128]{1,0:T(1,128)}', space=vmem, size = 0x12000, scoped, tag = 'internal scratch']
  #allocation2 [shape = 'f32[6,64]{1,0:T(8,128)}', space=vmem, size = 0x1000, scoped, tag = 'scratch operand']
  #allocation3 [shape = 'f32[6,64]{1,0:T(8,128)}', space=vmem, size = 0x1000, scoped, tag = 'scratch operand']
  #allocation4 [shape = 'bf16[2,64]{1,0:T(2,128)(2,1)}', space=vmem, size = 0x200, scoped, tag = 'scratch operand']
  %s0 = inlined_call_operand.hbm [shape: bf16[64,256], index: 0, kind: input, shape index: {}]
  %s1 = inlined_call_operand.hbm [shape: bf16[2,64,256], index: 1, kind: input, shape index: {}]
  %s2 = inlined_call_operand.hbm [shape: bf16[3,64,256], index: 2, kind: input, shape index: {}]
  %s3 = inlined_call_operand.hbm [shape: f32[3,1,256], index: 3, kind: input, shape index: {}]
  %s4 = inlined_call_operand.hbm [shape: bf16[64,64], index: 4, kind: input, shape index: {}]
  %s5 = inlined_call_operand.vmem [shape: f32[1,64], index: 5, kind: input, shape index: {}]
  %s6 = inlined_call_operand.vmem [shape: f32[6,64], index: 6, kind: input, shape index: {}]
  %s7 = inlined_call_operand.vmem [shape: f32[6,64], index: 7, kind: input, shape index: {}]
  %s8 = inlined_call_operand.hbm [shape: f32[31,2,64], index: 8, kind: output, shape index: {0}]
  %s9 = inlined_call_operand.hbm [shape: f32[6,64], index: 9, kind: output, shape index: {1}]
  %s10 = inlined_call_operand.hbm [shape: f32[6,64], index: 10, kind: output, shape index: {2}]
  %11 = xla_tuple %s8, %s9, %s10
  %s12 = sld [smem:[#allocation0]]
  $region85: #{tpu_custom_call.1} parent=0
    _
  %s14 = ssub.s32 1, %s12
  %s15 = scalar_select 0, %s14, %s12
  $region1: #{tpu_custom_call.1} parent=0
    #allocation5 [shape = 'u8[32768]{0}', space=vmem, size = 0x8000, scoped, tag = 'input window, operand 0, single buffered']
    #allocation6 [shape = 's32[1]{0}', space=sflag, size = 0x4, scoped, tag = 'scoped memory for tpu_custom_call.1']
    #allocation7 [shape = 's32[1]{0}', space=sflag, size = 0x4, scoped, tag = 'scoped memory for tpu_custom_call.1']
    #allocation8 [shape = 'u8[65536]{0}', space=vmem, size = 0x10000, scoped, tag = 'input window, operand 1, single buffered']
    #allocation9 [shape = 's32[1]{0}', space=sflag, size = 0x4, scoped, tag = 'scoped memory for tpu_custom_call.1']
    #allocation10 [shape = 'u8[98304]{0}', space=vmem, size = 0x18000, scoped, tag = 'input window, operand 2, single buffered']
    #allocation11 [shape = 'u8[3072]{0}', space=vmem, size = 0xc00, scoped, tag = 'input window, operand 3, single buffered']
    #allocation12 [shape = 's32[1]{0}', space=sflag, size = 0x4, scoped, tag = 'scoped memory for tpu_custom_call.1']
    #allocation13 [shape = 'u8[16384]{0}', space=vmem, size = 0x4000, scoped, tag = 'input window, operand 4, single buffered']
    #allocation14 [shape = 'u8[31744]{0}', space=vmem, size = 0x7c00, scoped, tag = 'output window, operand 0, single buffered']
    #allocation15 [shape = 'u8[4096]{0}', space=vmem, size = 0x1000, scoped, tag = 'output window, operand 1, single buffered']
    #allocation16 [shape = 's32[1]{0}', space=sflag, size = 0x4, scoped, tag = 'scoped memory for tpu_custom_call.1']
    #allocation17 [shape = 'u8[4096]{0}', space=vmem, size = 0x1000, scoped, tag = 'output window, operand 2, single buffered']
    %16 = vsyncpa [#allocation6], 0
    %17 = vsyncpa [#allocation9], 0
    %18 = vsyncpa [#allocation12], 0
    %19 = vsyncpa [#allocation7], 0
    %20 = vsyncpa [#allocation16], 0
    // Predicated region
    $region2: #{tpu_custom_call.1} parent=1 // pred_check
      _
    $region3: #{tpu_custom_call.1} parent=1 // pred_check_branch
      %22 = sbr.rel (0) target = $region5
    $region4: #{tpu_custom_call.1} parent=1 // pred_region
      %s24 = ssub.s32 1024, 1024
      %25 = vsyncadd [#allocation6], %s24
      %s26 = sshll.u32 [#allocation5], 4
      %s27 = int_to_ptr.vmem [resolvable:$true] %s26
      %32 = dma.hbm_to_vmem [thread:$0]  %s0, 1024, %s27, [#allocation6], 128, 128, 8
    $region5: #{tpu_custom_call.1} parent=1 // pred_fallthru
      _
    // Predicated region
    $region6: #{tpu_custom_call.1} parent=1 // pred_check
      _
    $region7: #{tpu_custom_call.1} parent=1 // pred_check_branch
      %34 = sbr.rel (0) target = $region9
    $region8: #{tpu_custom_call.1} parent=1 // pred_region
      %s36 = ssub.s32 2048, 2048
      %37 = vsyncadd [#allocation9], %s36
      %s38 = sshll.u32 [#allocation8], 4
      %s39 = int_to_ptr.vmem [resolvable:$true] %s38
      %44 = dma.hbm_to_vmem [thread:$0]  %s1, 2048, %s39, [#allocation9], 128, 128, 8
    $region9: #{tpu_custom_call.1} parent=1 // pred_fallthru
      _
    // Predicated region
    $region10: #{tpu_custom_call.1} parent=1 // pred_check
      _
    $region11: #{tpu_custom_call.1} parent=1 // pred_check_branch
      %46 = sbr.rel (0) target = $region13
    $region12: #{tpu_custom_call.1} parent=1 // pred_region
      %s48 = ssub.s32 3072, 3072
      %49 = vsyncadd [#allocation9], %s48
      %s50 = sshll.u32 [#allocation10], 4
      %s51 = int_to_ptr.vmem [resolvable:$true] %s50
      %56 = dma.hbm_to_vmem [thread:$0]  %s2, 3072, %s51, [#allocation9], 128, 128, 8
    $region13: #{tpu_custom_call.1} parent=1 // pred_fallthru
      _
    // Predicated region
    $region14: #{tpu_custom_call.1} parent=1 // pred_check
      _
    $region15: #{tpu_custom_call.1} parent=1 // pred_check_branch
      %58 = sbr.rel (0) target = $region17
    $region16: #{tpu_custom_call.1} parent=1 // pred_region
      %s60 = ssub.s32 96, 96
      %61 = vsyncadd [#allocation12], %s60
      %s62 = sshll.u32 [#allocation11], 4
      %s63 = int_to_ptr.vmem [resolvable:$true] %s62
      %68 = dma.hbm_to_vmem [thread:$0]  %s3, 96, %s63, [#allocation12], 32, 32, 2
    $region17: #{tpu_custom_call.1} parent=1 // pred_fallthru
      _
    // Predicated region
    $region18: #{tpu_custom_call.1} parent=1 // pred_check
      _
    $region19: #{tpu_custom_call.1} parent=1 // pred_check_branch
      %70 = sbr.rel (0) target = $region21
    $region20: #{tpu_custom_call.1} parent=1 // pred_region
      %s72 = ssub.s32 512, 512
      %73 = vsyncadd [#allocation12], %s72
      %s74 = sshll.u32 [#allocation13], 4
      %s75 = int_to_ptr.vmem [resolvable:$true] %s74
      %80 = dma.hbm_to_vmem [thread:$0]  %s4, 512, %s75, [#allocation12], 64, 64, 4
    $region21: #{tpu_custom_call.1} parent=1 // pred_fallthru
      _
    // Predicated region
    $region22: #{tpu_custom_call.1} parent=1 // pred_check
      _
    $region23: #{tpu_custom_call.1} parent=1 // pred_check_branch
      %82 = sbr.rel (0) target = $region25
    $region24: #{tpu_custom_call.1} parent=1 // pred_region
      _
    $region25: #{tpu_custom_call.1} parent=1 // pred_fallthru
      _
    // Predicated region
    $region26: #{tpu_custom_call.1} parent=1 // pred_check
      _
    $region27: #{tpu_custom_call.1} parent=1 // pred_check_branch
      %84 = sbr.rel (0) target = $region29
    $region28: #{tpu_custom_call.1} parent=1 // pred_region
      _
    $region29: #{tpu_custom_call.1} parent=1 // pred_fallthru
      _
    // Predicated region
    $region30: #{tpu_custom_call.1} parent=1 // pred_check
      _
    $region31: #{tpu_custom_call.1} parent=1 // pred_check_branch
      %86 = sbr.rel (0) target = $region33
    $region32: #{tpu_custom_call.1} parent=1 // pred_region
      _
    $region33: #{tpu_custom_call.1} parent=1 // pred_fallthru
      _
    // Predicated region
    $region34: #{tpu_custom_call.1} parent=1 // pred_check
      _
    $region35: #{tpu_custom_call.1} parent=1 // pred_check_branch
      %88 = sbr.rel (0) target = $region37
    $region36: #{tpu_custom_call.1} parent=1 // pred_region
      %89 = dma.done [#allocation6], 1024
    $region37: #{tpu_custom_call.1} parent=1 // pred_fallthru
      _
    // Predicated region
    $region38: #{tpu_custom_call.1} parent=1 // pred_check
      _
    $region39: #{tpu_custom_call.1} parent=1 // pred_check_branch
      %91 = sbr.rel (0) target = $region41
    $region40: #{tpu_custom_call.1} parent=1 // pred_region
      %92 = dma.done [#allocation9], 2048
    $region41: #{tpu_custom_call.1} parent=1 // pred_fallthru
      _
    // Predicated region
    $region42: #{tpu_custom_call.1} parent=1 // pred_check
      _
    $region43: #{tpu_custom_call.1} parent=1 // pred_check_branch
      %94 = sbr.rel (0) target = $region45
    $region44: #{tpu_custom_call.1} parent=1 // pred_region
      %95 = dma.done [#allocation9], 3072
    $region45: #{tpu_custom_call.1} parent=1 // pred_fallthru
      _
    // Predicated region
    $region46: #{tpu_custom_call.1} parent=1 // pred_check
      _
    $region47: #{tpu_custom_call.1} parent=1 // pred_check_branch
      %97 = sbr.rel (0) target = $region49
    $region48: #{tpu_custom_call.1} parent=1 // pred_region
      %98 = dma.done [#allocation12], 96
    $region49: #{tpu_custom_call.1} parent=1 // pred_fallthru
      _
    // Predicated region
    $region50: #{tpu_custom_call.1} parent=1 // pred_check
      _
    $region51: #{tpu_custom_call.1} parent=1 // pred_check_branch
      %100 = sbr.rel (0) target = $region53
    $region52: #{tpu_custom_call.1} parent=1 // pred_region
      %101 = dma.done [#allocation12], 512
    $region53: #{tpu_custom_call.1} parent=1 // pred_fallthru
      _
    %v103 = vld [vmem:[%s6] sm:$0x3f]
    %vm104 = vcmask 521216
    %105 = vst.msk [vmem:[#allocation2] sm:$0x3f] %vm104, %v103
    %v106 = vld [vmem:[%s7] sm:$0x3f]
    %107 = vst.msk [vmem:[#allocation3] sm:$0x3f] %vm104, %v106
    %v108 = vlaneseq
    %v109 = vand.u32 %v108, 127
    %v110 = vld [vmem:[#allocation11] sm:$0x3]
    %s111 = scalar_lea.vmem [#allocation11], 2
    %v112 = vld [vmem:[%s111] sm:$0x3]
    %s113 = scalar_lea.vmem [#allocation11], 4
    %v114 = vld [vmem:[%s113] sm:$0x3]
    %v115 = vld [vmem:[%s5] sm:$0x1]
    %vm116 = vcmp.eq.s32.totalorder %v109, 0
    %v117 = vsel %vm116, 1.0, 0.0
    %v118 = vpack.c.bf16 %v117, %v117
    %vm119 = vcmask 516096
    %120 = vst.msk [vmem:[#allocation4] sm:$0x1] %vm119, %v118
    loop: start=0, step=1, limit=31
    $region54: #{tpu_custom_call.1} parent=1 // loop_pre_header
      _
    $region55: #{tpu_custom_call.1} parent=1 // loop_header
      %s122 = sphi 0, %s126
      %p123 = scmp.ge.s32.totalorder %s122, 31
    $region56: #{tpu_custom_call.1} parent=1 // loop_header_branch
      %125 = sbr.rel (%p123) target = $region60
    $region57: #{tpu_custom_call.1} parent=1 // loop_body
      %v127 = vld [vmem:[#allocation4] sm:$0x1]
      %v128 = vld [vmem:[#allocation5] sm:$0xff]
      %v129 = vld [vmem:[#allocation5 + $0x8] sm:$0xff]
      %v130 = vld [vmem:[#allocation5 + $0x10] sm:$0xff]
      %v131 = vld [vmem:[#allocation5 + $0x18] sm:$0xff]
      %v132 = vld [vmem:[#allocation5 + $0x20] sm:$0xff]
      %v133 = vld [vmem:[#allocation5 + $0x28] sm:$0xff]
      %v134 = vld [vmem:[#allocation5 + $0x30] sm:$0xff]
      %v135 = vld [vmem:[#allocation5 + $0x38] sm:$0xff]
      %v136 = vld [vmem:[#allocation10] sm:$0xff]
      %v137 = vld [vmem:[#allocation10 + $0x8] sm:$0xff]
      %v138 = vld [vmem:[#allocation10 + $0x10] sm:$0xff]
      %v139 = vld [vmem:[#allocation10 + $0x18] sm:$0xff]
      %v140 = vld [vmem:[#allocation10 + $0x20] sm:$0xff]
      %v141 = vld [vmem:[#allocation10 + $0x28] sm:$0xff]
      %v142 = vld [vmem:[#allocation10 + $0x30] sm:$0xff]
      %v143 = vld [vmem:[#allocation10 + $0x38] sm:$0xff]
      %v144 = vld [vmem:[#allocation2] sm:$0x3]
      %v145 = vld [vmem:[#allocation3] sm:$0x3]
      %v146 = vpack.c.bf16 %v144, %v144
      %v155 = vunpack.c.l.b16 %v136
      %v156 = vunpack.c.h.b16 %v136
      %v157 = vunpack.c.l.b16 %v137
      %v158 = vunpack.c.h.b16 %v137
      %v159 = vunpack.c.l.b16 %v138
      %v160 = vunpack.c.h.b16 %v138
      %v161 = vunpack.c.l.b16 %v139
      %v162 = vunpack.c.h.b16 %v139
      %v163 = vunpack.c.l.b16 %v140
      %v164 = vunpack.c.h.b16 %v140
      %v165 = vunpack.c.l.b16 %v141
      %v166 = vunpack.c.h.b16 %v141
      %v167 = vunpack.c.l.b16 %v142
      %v168 = vunpack.c.h.b16 %v142
      %v169 = vunpack.c.l.b16 %v143
      %v170 = vunpack.c.h.b16 %v143
      %v171 = vpack.c.b16 %v157, %v155
      %v172 = vpack.c.b16 %v158, %v156
      %v173 = vpack.c.b16 %v161, %v159
      %v174 = vpack.c.b16 %v162, %v160
      %v175 = vpack.c.b16 %v165, %v163
      %v176 = vpack.c.b16 %v166, %v164
      %v177 = vpack.c.b16 %v169, %v167
      %v178 = vpack.c.b16 %v170, %v168
      %vm187 = vcmask 523264
      %v189 = vsel %vm187, %v146, 0
      %191 = vmatprep.subr.bf16.mxu0 %v172
      %192 = vmatpush1.bf16.msra.mxu0 %v171
      %193 = vmatprep.subr.bf16.mxu0 %v174
      %194 = vmatpush1.bf16.msra.mxu0 %v173
      %195 = vmatprep.subr.bf16.mxu0 %v176
      %196 = vmatpush1.bf16.msra.mxu0 %v175
      %197 = vmatprep.subr.bf16.mxu0 %v178
      %198 = vmatpush1.bf16.msra.mxu0 %v177
      %199 = vmatprep.subr.bf16.mxu0 0
      %200 = vmatpush1.bf16.msra.mxu0 0
      %201 = vmatprep.subr.bf16.mxu0 0
      %202 = vmatpush1.bf16.msra.mxu0 0
      %203 = vmatprep.subr.bf16.mxu0 0
      %204 = vmatpush1.bf16.msra.mxu0 0
      %205 = vmatprep.subr.bf16.mxu0 0
      %206 = vmatpush1.bf16.msra.mxu0 0
      %207 = vmatprep.subr.bf16.mxu0 0
      %208 = vmatpush1.bf16.msra.mxu0 0
      %209 = vmatprep.subr.bf16.mxu0 0
      %210 = vmatpush1.bf16.msra.mxu0 0
      %211 = vmatprep.subr.bf16.mxu0 0
      %212 = vmatpush1.bf16.msra.mxu0 0
      %213 = vmatprep.subr.bf16.mxu0 0
      %214 = vmatpush1.bf16.msra.mxu0 0
      %215 = vmatprep.subr.bf16.mxu0 0
      %216 = vmatpush1.bf16.msra.mxu0 0
      %217 = vmatprep.subr.bf16.mxu0 0
      %218 = vmatpush1.bf16.msra.mxu0 0
      %219 = vmatprep.subr.bf16.mxu0 0
      %220 = vmatpush1.bf16.msra.mxu0 0
      %221 = vmatprep.subr.bf16.mxu0 0
      %222 = vmatpush1.bf16.msra.mxu0 0
      %223 = vmatprep.mubr.bf16.mxu0 0
      %224 = vmatmul.mubr.bf16.gmra.mrb[0].mxu0 %v189
      %v225 = vpop.f32.mrb[0].mxu0
      %v226 = vadd.f32 0.0, %v225
      %v227 = vpop.f32.mrb[0].mxu0
      %v228 = vadd.f32 0.0, %v227
      %v229 = vpop.f32.mrb[0].mxu0
      %v230 = vpop.f32.mrb[0].mxu0
      %231 = vdwg.mxu0
      %v240 = vunpack.c.l.b16 %v128
      %v241 = vunpack.c.h.b16 %v128
      %v242 = vunpack.c.l.b16 %v129
      %v243 = vunpack.c.h.b16 %v129
      %v244 = vunpack.c.l.b16 %v130
      %v245 = vunpack.c.h.b16 %v130
      %v246 = vunpack.c.l.b16 %v131
      %v247 = vunpack.c.h.b16 %v131
      %v248 = vunpack.c.l.b16 %v132
      %v249 = vunpack.c.h.b16 %v132
      %v250 = vunpack.c.l.b16 %v133
      %v251 = vunpack.c.h.b16 %v133
      %v252 = vunpack.c.l.b16 %v134
      %v253 = vunpack.c.h.b16 %v134
      %v254 = vunpack.c.l.b16 %v135
      %v255 = vunpack.c.h.b16 %v135
      %v256 = vpack.c.b16 %v242, %v240
      %v257 = vpack.c.b16 %v243, %v241
      %v258 = vpack.c.b16 %v246, %v244
      %v259 = vpack.c.b16 %v247, %v245
      %v260 = vpack.c.b16 %v250, %v248
      %v261 = vpack.c.b16 %v251, %v249
      %v262 = vpack.c.b16 %v254, %v252
      %v263 = vpack.c.b16 %v255, %v253
      %v273 = vsel %vm187, %v127, 0
      %275 = vmatprep.subr.bf16.mxu0 %v257
      %276 = vmatpush1.bf16.msra.mxu0 %v256
      %277 = vmatprep.subr.bf16.mxu0 %v259
      %278 = vmatpush1.bf16.msra.mxu0 %v258
      %279 = vmatprep.subr.bf16.mxu0 %v261
      %280 = vmatpush1.bf16.msra.mxu0 %v260
      %281 = vmatprep.subr.bf16.mxu0 %v263
      %282 = vmatpush1.bf16.msra.mxu0 %v262
      %283 = vmatprep.subr.bf16.mxu0 0
      %284 = vmatpush1.bf16.msra.mxu0 0
      %285 = vmatprep.subr.bf16.mxu0 0
      %286 = vmatpush1.bf16.msra.mxu0 0
      %287 = vmatprep.subr.bf16.mxu0 0
      %288 = vmatpush1.bf16.msra.mxu0 0
      %289 = vmatprep.subr.bf16.mxu0 0
      %290 = vmatpush1.bf16.msra.mxu0 0
      %291 = vmatprep.subr.bf16.mxu0 0
      %292 = vmatpush1.bf16.msra.mxu0 0
      %293 = vmatprep.subr.bf16.mxu0 0
      %294 = vmatpush1.bf16.msra.mxu0 0
      %295 = vmatprep.subr.bf16.mxu0 0
      %296 = vmatpush1.bf16.msra.mxu0 0
      %297 = vmatprep.subr.bf16.mxu0 0
      %298 = vmatpush1.bf16.msra.mxu0 0
      %299 = vmatprep.subr.bf16.mxu0 0
      %300 = vmatpush1.bf16.msra.mxu0 0
      %301 = vmatprep.subr.bf16.mxu0 0
      %302 = vmatpush1.bf16.msra.mxu0 0
      %303 = vmatprep.subr.bf16.mxu0 0
      %304 = vmatpush1.bf16.msra.mxu0 0
      %305 = vmatprep.subr.bf16.mxu0 0
      %306 = vmatpush1.bf16.msra.mxu0 0
      %307 = vmatprep.mubr.bf16.mxu0 0
      %308 = vmatmul.mubr.bf16.gmra.mrb[0].mxu0 %v273
      %v309 = vpop.f32.mrb[0].mxu0
      %v310 = vadd.f32 %v226, %v309
      %v311 = vpop.f32.mrb[0].mxu0
      %v312 = vadd.f32 %v228, %v311
      %v313 = vpop.f32.mrb[0].mxu0
      %v314 = vpop.f32.mrb[0].mxu0
      %315 = vdwg.mxu0
      %v317 = vlaneseq
      %v318 = vshrl.u32 %v317, 7
      %v319 = vsub.s32 0, %v318
      %v320 = vrot.slane %v110, %v319
      %v321 = vlaneseq
      %v322 = vshrl.u32 %v321, 7
      %v323 = vsub.s32 1, %v322
      %v324 = vrot.slane %v110, %v323
      %v327 = vadd.f32 %v310, %v320
      %v328 = vadd.f32 %v312, %v324
      %v329 = vxor.u32 %v327, 2147483648
      %v330 = vxor.u32 %v328, 2147483648
      %v331 = vmul.f32 %v329, 1.442695
      %v332 = vpow.pop %v331
      %v333 = vmul.f32 %v330, 1.442695
      %v334 = vpow.pop %v333
      %v335 = vadd.f32 %v332, 1.0
      %v336 = vadd.f32 %v334, 1.0
      %v337 = vrcp.pop %v335
      %v338 = vmul.f32 1.0, %v337
      %v339 = vrcp.pop %v336
      %v340 = vmul.f32 1.0, %v339
      %v341 = vtanh.pop %v328
      %343 = vrot.lane.b32.xlu0 %v145, 64
      %v344 = vpop.permute.xlu0 %343
      %v346 = vmul.f32 %v338, %v344
      %348 = vrot.lane.b32.xlu0 %v341, 64
      %v349 = vpop.permute.xlu0 %348
      %v351 = vmul.f32 %v338, %v349
      %353 = vrot.lane.b32.xlu0 %v351, 64
      %v354 = vpop.permute.xlu0 %353
      %v356 = vadd.f32 %v346, %v354
      %v357 = vtanh.pop %v356
      %359 = vrot.lane.b32.xlu0 %v357, 64
      %v360 = vpop.permute.xlu0 %359
      %v362 = vmul.f32 %v340, %v360
      %vm363 = vcmask 517120
      %364 = vst.msk [vmem:[#allocation2] sm:$0x3] %vm363, %v362
      %366 = vrot.lane.b32.xlu0 %v356, 64
      %v367 = vpop.permute.xlu0 %366
      %369 = vst.msk [vmem:[#allocation3] sm:$0x3] %vm363, %v367
      %v370 = vpack.c.bf16 %v362, %v362
      %v371 = vld [vmem:[#allocation8] sm:$0xff]
      %v372 = vld [vmem:[#allocation8 + $0x8] sm:$0xff]
      %v373 = vld [vmem:[#allocation8 + $0x10] sm:$0xff]
      %v374 = vld [vmem:[#allocation8 + $0x18] sm:$0xff]
      %v375 = vld [vmem:[#allocation8 + $0x20] sm:$0xff]
      %v376 = vld [vmem:[#allocation8 + $0x28] sm:$0xff]
      %v377 = vld [vmem:[#allocation8 + $0x30] sm:$0xff]
      %v378 = vld [vmem:[#allocation8 + $0x38] sm:$0xff]
      %s379 = scalar_lea.vmem [#allocation10], 64
      %v380 = vld [vmem:[%s379] sm:$0xff]
      %v381 = vld [vmem:[%s379 + $0x8] sm:$0xff]
      %v382 = vld [vmem:[%s379 + $0x10] sm:$0xff]
      %v383 = vld [vmem:[%s379 + $0x18] sm:$0xff]
      %v384 = vld [vmem:[%s379 + $0x20] sm:$0xff]
      %v385 = vld [vmem:[%s379 + $0x28] sm:$0xff]
      %v386 = vld [vmem:[%s379 + $0x30] sm:$0xff]
      %v387 = vld [vmem:[%s379 + $0x38] sm:$0xff]
      %v388 = vld [vmem:[#allocation2 + $0x2] sm:$0x3]
      %v389 = vld [vmem:[#allocation3 + $0x2] sm:$0x3]
      %v390 = vpack.c.bf16 %v388, %v388
      %v399 = vunpack.c.l.b16 %v380
      %v400 = vunpack.c.h.b16 %v380
      %v401 = vunpack.c.l.b16 %v381
      %v402 = vunpack.c.h.b16 %v381
      %v403 = vunpack.c.l.b16 %v382
      %v404 = vunpack.c.h.b16 %v382
      %v405 = vunpack.c.l.b16 %v383
      %v406 = vunpack.c.h.b16 %v383
      %v407 = vunpack.c.l.b16 %v384
      %v408 = vunpack.c.h.b16 %v384
      %v409 = vunpack.c.l.b16 %v385
      %v410 = vunpack.c.h.b16 %v385
      %v411 = vunpack.c.l.b16 %v386
      %v412 = vunpack.c.h.b16 %v386
      %v413 = vunpack.c.l.b16 %v387
      %v414 = vunpack.c.h.b16 %v387
      %v415 = vpack.c.b16 %v401, %v399
      %v416 = vpack.c.b16 %v402, %v400
      %v417 = vpack.c.b16 %v405, %v403
      %v418 = vpack.c.b16 %v406, %v404
      %v419 = vpack.c.b16 %v409, %v407
      %v420 = vpack.c.b16 %v410, %v408
      %v421 = vpack.c.b16 %v413, %v411
      %v422 = vpack.c.b16 %v414, %v412
      %v432 = vsel %vm187, %v390, 0
      %434 = vmatprep.subr.bf16.mxu0 %v416
      %435 = vmatpush1.bf16.msra.mxu0 %v415
      %436 = vmatprep.subr.bf16.mxu0 %v418
      %437 = vmatpush1.bf16.msra.mxu0 %v417
      %438 = vmatprep.subr.bf16.mxu0 %v420
      %439 = vmatpush1.bf16.msra.mxu0 %v419
      %440 = vmatprep.subr.bf16.mxu0 %v422
      %441 = vmatpush1.bf16.msra.mxu0 %v421
      %442 = vmatprep.subr.bf16.mxu0 0
      %443 = vmatpush1.bf16.msra.mxu0 0
      %444 = vmatprep.subr.bf16.mxu0 0
      %445 = vmatpush1.bf16.msra.mxu0 0
      %446 = vmatprep.subr.bf16.mxu0 0
      %447 = vmatpush1.bf16.msra.mxu0 0
      %448 = vmatprep.subr.bf16.mxu0 0
      %449 = vmatpush1.bf16.msra.mxu0 0
      %450 = vmatprep.subr.bf16.mxu0 0
      %451 = vmatpush1.bf16.msra.mxu0 0
      %452 = vmatprep.subr.bf16.mxu0 0
      %453 = vmatpush1.bf16.msra.mxu0 0
      %454 = vmatprep.subr.bf16.mxu0 0
      %455 = vmatpush1.bf16.msra.mxu0 0
      %456 = vmatprep.subr.bf16.mxu0 0
      %457 = vmatpush1.bf16.msra.mxu0 0
      %458 = vmatprep.subr.bf16.mxu0 0
      %459 = vmatpush1.bf16.msra.mxu0 0
      %460 = vmatprep.subr.bf16.mxu0 0
      %461 = vmatpush1.bf16.msra.mxu0 0
      %462 = vmatprep.subr.bf16.mxu0 0
      %463 = vmatpush1.bf16.msra.mxu0 0
      %464 = vmatprep.subr.bf16.mxu0 0
      %465 = vmatpush1.bf16.msra.mxu0 0
      %466 = vmatprep.mubr.bf16.mxu0 0
      %467 = vmatmul.mubr.bf16.gmra.mrb[0].mxu0 %v432
      %v468 = vpop.f32.mrb[0].mxu0
      %v469 = vadd.f32 0.0, %v468
      %v470 = vpop.f32.mrb[0].mxu0
      %v471 = vadd.f32 0.0, %v470
      %v472 = vpop.f32.mrb[0].mxu0
      %v473 = vpop.f32.mrb[0].mxu0
      %474 = vdwg.mxu0
      %v483 = vunpack.c.l.b16 %v371
      %v484 = vunpack.c.h.b16 %v371
      %v485 = vunpack.c.l.b16 %v372
      %v486 = vunpack.c.h.b16 %v372
      %v487 = vunpack.c.l.b16 %v373
      %v488 = vunpack.c.h.b16 %v373
      %v489 = vunpack.c.l.b16 %v374
      %v490 = vunpack.c.h.b16 %v374
      %v491 = vunpack.c.l.b16 %v375
      %v492 = vunpack.c.h.b16 %v375
      %v493 = vunpack.c.l.b16 %v376
      %v494 = vunpack.c.h.b16 %v376
      %v495 = vunpack.c.l.b16 %v377
      %v496 = vunpack.c.h.b16 %v377
      %v497 = vunpack.c.l.b16 %v378
      %v498 = vunpack.c.h.b16 %v378
      %v499 = vpack.c.b16 %v485, %v483
      %v500 = vpack.c.b16 %v486, %v484
      %v501 = vpack.c.b16 %v489, %v487
      %v502 = vpack.c.b16 %v490, %v488
      %v503 = vpack.c.b16 %v493, %v491
      %v504 = vpack.c.b16 %v494, %v492
      %v505 = vpack.c.b16 %v497, %v495
      %v506 = vpack.c.b16 %v498, %v496
      %v516 = vsel %vm187, %v370, 0
      %518 = vmatprep.subr.bf16.mxu0 %v500
      %519 = vmatpush1.bf16.msra.mxu0 %v499
      %520 = vmatprep.subr.bf16.mxu0 %v502
      %521 = vmatpush1.bf16.msra.mxu0 %v501
      %522 = vmatprep.subr.bf16.mxu0 %v504
      %523 = vmatpush1.bf16.msra.mxu0 %v503
      %524 = vmatprep.subr.bf16.mxu0 %v506
      %525 = vmatpush1.bf16.msra.mxu0 %v505
      %526 = vmatprep.subr.bf16.mxu0 0
      %527 = vmatpush1.bf16.msra.mxu0 0
      %528 = vmatprep.subr.bf16.mxu0 0
      %529 = vmatpush1.bf16.msra.mxu0 0
      %530 = vmatprep.subr.bf16.mxu0 0
      %531 = vmatpush1.bf16.msra.mxu0 0
      %532 = vmatprep.subr.bf16.mxu0 0
      %533 = vmatpush1.bf16.msra.mxu0 0
      %534 = vmatprep.subr.bf16.mxu0 0
      %535 = vmatpush1.bf16.msra.mxu0 0
      %536 = vmatprep.subr.bf16.mxu0 0
      %537 = vmatpush1.bf16.msra.mxu0 0
      %538 = vmatprep.subr.bf16.mxu0 0
      %539 = vmatpush1.bf16.msra.mxu0 0
      %540 = vmatprep.subr.bf16.mxu0 0
      %541 = vmatpush1.bf16.msra.mxu0 0
      %542 = vmatprep.subr.bf16.mxu0 0
      %543 = vmatpush1.bf16.msra.mxu0 0
      %544 = vmatprep.subr.bf16.mxu0 0
      %545 = vmatpush1.bf16.msra.mxu0 0
      %546 = vmatprep.subr.bf16.mxu0 0
      %547 = vmatpush1.bf16.msra.mxu0 0
      %548 = vmatprep.subr.bf16.mxu0 0
      %549 = vmatpush1.bf16.msra.mxu0 0
      %550 = vmatprep.mubr.bf16.mxu0 0
      %551 = vmatmul.mubr.bf16.gmra.mrb[0].mxu0 %v516
      %v552 = vpop.f32.mrb[0].mxu0
      %v553 = vadd.f32 %v469, %v552
      %v554 = vpop.f32.mrb[0].mxu0
      %v555 = vadd.f32 %v471, %v554
      %v556 = vpop.f32.mrb[0].mxu0
      %v557 = vpop.f32.mrb[0].mxu0
      %558 = vdwg.mxu0
      %v560 = vlaneseq
      %v561 = vshrl.u32 %v560, 7
      %v562 = vsub.s32 0, %v561
      %v563 = vrot.slane %v112, %v562
      %v564 = vlaneseq
      %v565 = vshrl.u32 %v564, 7
      %v566 = vsub.s32 1, %v565
      %v567 = vrot.slane %v112, %v566
      %v570 = vadd.f32 %v553, %v563
      %v571 = vadd.f32 %v555, %v567
      %v572 = vxor.u32 %v570, 2147483648
      %v573 = vxor.u32 %v571, 2147483648
      %v574 = vmul.f32 %v572, 1.442695
      %v575 = vpow.pop %v574
      %v576 = vmul.f32 %v573, 1.442695
      %v577 = vpow.pop %v576
      %v578 = vadd.f32 %v575, 1.0
      %v579 = vadd.f32 %v577, 1.0
      %v580 = vrcp.pop %v578
      %v581 = vmul.f32 1.0, %v580
      %v582 = vrcp.pop %v579
      %v583 = vmul.f32 1.0, %v582
      %v584 = vtanh.pop %v571
      %586 = vrot.lane.b32.xlu0 %v389, 64
      %v587 = vpop.permute.xlu0 %586
      %v589 = vmul.f32 %v581, %v587
      %591 = vrot.lane.b32.xlu0 %v584, 64
      %v592 = vpop.permute.xlu0 %591
      %v594 = vmul.f32 %v581, %v592
      %596 = vrot.lane.b32.xlu0 %v594, 64
      %v597 = vpop.permute.xlu0 %596
      %v599 = vadd.f32 %v589, %v597
      %v600 = vtanh.pop %v599
      %602 = vrot.lane.b32.xlu0 %v600, 64
      %v603 = vpop.permute.xlu0 %602
      %v605 = vmul.f32 %v583, %v603
      %606 = vst.msk [vmem:[#allocation2 + $0x2] sm:$0x3] %vm363, %v605
      %608 = vrot.lane.b32.xlu0 %v599, 64
      %v609 = vpop.permute.xlu0 %608
      %611 = vst.msk [vmem:[#allocation3 + $0x2] sm:$0x3] %vm363, %v609
      %v612 = vpack.c.bf16 %v605, %v605
      %s613 = scalar_lea.vmem [#allocation8], 64
      %v614 = vld [vmem:[%s613] sm:$0xff]
      %v615 = vld [vmem:[%s613 + $0x8] sm:$0xff]
      %v616 = vld [vmem:[%s613 + $0x10] sm:$0xff]
      %v617 = vld [vmem:[%s613 + $0x18] sm:$0xff]
      %v618 = vld [vmem:[%s613 + $0x20] sm:$0xff]
      %v619 = vld [vmem:[%s613 + $0x28] sm:$0xff]
      %v620 = vld [vmem:[%s613 + $0x30] sm:$0xff]
      %v621 = vld [vmem:[%s613 + $0x38] sm:$0xff]
      %s622 = scalar_lea.vmem [#allocation10], 128
      %v623 = vld [vmem:[%s622] sm:$0xff]
      %v624 = vld [vmem:[%s622 + $0x8] sm:$0xff]
      %v625 = vld [vmem:[%s622 + $0x10] sm:$0xff]
      %v626 = vld [vmem:[%s622 + $0x18] sm:$0xff]
      %v627 = vld [vmem:[%s622 + $0x20] sm:$0xff]
      %v628 = vld [vmem:[%s622 + $0x28] sm:$0xff]
      %v629 = vld [vmem:[%s622 + $0x30] sm:$0xff]
      %v630 = vld [vmem:[%s622 + $0x38] sm:$0xff]
      %v631 = vld [vmem:[#allocation2 + $0x4] sm:$0x3]
      %v632 = vld [vmem:[#allocation3 + $0x4] sm:$0x3]
      %v633 = vpack.c.bf16 %v631, %v631
      %v642 = vunpack.c.l.b16 %v623
      %v643 = vunpack.c.h.b16 %v623
      %v644 = vunpack.c.l.b16 %v624
      %v645 = vunpack.c.h.b16 %v624
      %v646 = vunpack.c.l.b16 %v625
      %v647 = vunpack.c.h.b16 %v625
      %v648 = vunpack.c.l.b16 %v626
      %v649 = vunpack.c.h.b16 %v626
      %v650 = vunpack.c.l.b16 %v627
      %v651 = vunpack.c.h.b16 %v627
      %v652 = vunpack.c.l.b16 %v628
      %v653 = vunpack.c.h.b16 %v628
      %v654 = vunpack.c.l.b16 %v629
      %v655 = vunpack.c.h.b16 %v629
      %v656 = vunpack.c.l.b16 %v630
      %v657 = vunpack.c.h.b16 %v630
      %v658 = vpack.c.b16 %v644, %v642
      %v659 = vpack.c.b16 %v645, %v643
      %v660 = vpack.c.b16 %v648, %v646
      %v661 = vpack.c.b16 %v649, %v647
      %v662 = vpack.c.b16 %v652, %v650
      %v663 = vpack.c.b16 %v653, %v651
      %v664 = vpack.c.b16 %v656, %v654
      %v665 = vpack.c.b16 %v657, %v655
      %v675 = vsel %vm187, %v633, 0
      %677 = vmatprep.subr.bf16.mxu0 %v659
      %678 = vmatpush1.bf16.msra.mxu0 %v658
      %679 = vmatprep.subr.bf16.mxu0 %v661
      %680 = vmatpush1.bf16.msra.mxu0 %v660
      %681 = vmatprep.subr.bf16.mxu0 %v663
      %682 = vmatpush1.bf16.msra.mxu0 %v662
      %683 = vmatprep.subr.bf16.mxu0 %v665
      %684 = vmatpush1.bf16.msra.mxu0 %v664
      %685 = vmatprep.subr.bf16.mxu0 0
      %686 = vmatpush1.bf16.msra.mxu0 0
      %687 = vmatprep.subr.bf16.mxu0 0
      %688 = vmatpush1.bf16.msra.mxu0 0
      %689 = vmatprep.subr.bf16.mxu0 0
      %690 = vmatpush1.bf16.msra.mxu0 0
      %691 = vmatprep.subr.bf16.mxu0 0
      %692 = vmatpush1.bf16.msra.mxu0 0
      %693 = vmatprep.subr.bf16.mxu0 0
      %694 = vmatpush1.bf16.msra.mxu0 0
      %695 = vmatprep.subr.bf16.mxu0 0
      %696 = vmatpush1.bf16.msra.mxu0 0
      %697 = vmatprep.subr.bf16.mxu0 0
      %698 = vmatpush1.bf16.msra.mxu0 0
      %699 = vmatprep.subr.bf16.mxu0 0
      %700 = vmatpush1.bf16.msra.mxu0 0
      %701 = vmatprep.subr.bf16.mxu0 0
      %702 = vmatpush1.bf16.msra.mxu0 0
      %703 = vmatprep.subr.bf16.mxu0 0
      %704 = vmatpush1.bf16.msra.mxu0 0
      %705 = vmatprep.subr.bf16.mxu0 0
      %706 = vmatpush1.bf16.msra.mxu0 0
      %707 = vmatprep.subr.bf16.mxu0 0
      %708 = vmatpush1.bf16.msra.mxu0 0
      %709 = vmatprep.mubr.bf16.mxu0 0
      %710 = vmatmul.mubr.bf16.gmra.mrb[0].mxu0 %v675
      %v711 = vpop.f32.mrb[0].mxu0
      %v712 = vadd.f32 0.0, %v711
      %v713 = vpop.f32.mrb[0].mxu0
      %v714 = vadd.f32 0.0, %v713
      %v715 = vpop.f32.mrb[0].mxu0
      %v716 = vpop.f32.mrb[0].mxu0
      %717 = vdwg.mxu0
      %v726 = vunpack.c.l.b16 %v614
      %v727 = vunpack.c.h.b16 %v614
      %v728 = vunpack.c.l.b16 %v615
      %v729 = vunpack.c.h.b16 %v615
      %v730 = vunpack.c.l.b16 %v616
      %v731 = vunpack.c.h.b16 %v616
      %v732 = vunpack.c.l.b16 %v617
      %v733 = vunpack.c.h.b16 %v617
      %v734 = vunpack.c.l.b16 %v618
      %v735 = vunpack.c.h.b16 %v618
      %v736 = vunpack.c.l.b16 %v619
      %v737 = vunpack.c.h.b16 %v619
      %v738 = vunpack.c.l.b16 %v620
      %v739 = vunpack.c.h.b16 %v620
      %v740 = vunpack.c.l.b16 %v621
      %v741 = vunpack.c.h.b16 %v621
      %v742 = vpack.c.b16 %v728, %v726
      %v743 = vpack.c.b16 %v729, %v727
      %v744 = vpack.c.b16 %v732, %v730
      %v745 = vpack.c.b16 %v733, %v731
      %v746 = vpack.c.b16 %v736, %v734
      %v747 = vpack.c.b16 %v737, %v735
      %v748 = vpack.c.b16 %v740, %v738
      %v749 = vpack.c.b16 %v741, %v739
      %v759 = vsel %vm187, %v612, 0
      %761 = vmatprep.subr.bf16.mxu0 %v743
      %762 = vmatpush1.bf16.msra.mxu0 %v742
      %763 = vmatprep.subr.bf16.mxu0 %v745
      %764 = vmatpush1.bf16.msra.mxu0 %v744
      %765 = vmatprep.subr.bf16.mxu0 %v747
      %766 = vmatpush1.bf16.msra.mxu0 %v746
      %767 = vmatprep.subr.bf16.mxu0 %v749
      %768 = vmatpush1.bf16.msra.mxu0 %v748
      %769 = vmatprep.subr.bf16.mxu0 0
      %770 = vmatpush1.bf16.msra.mxu0 0
      %771 = vmatprep.subr.bf16.mxu0 0
      %772 = vmatpush1.bf16.msra.mxu0 0
      %773 = vmatprep.subr.bf16.mxu0 0
      %774 = vmatpush1.bf16.msra.mxu0 0
      %775 = vmatprep.subr.bf16.mxu0 0
      %776 = vmatpush1.bf16.msra.mxu0 0
      %777 = vmatprep.subr.bf16.mxu0 0
      %778 = vmatpush1.bf16.msra.mxu0 0
      %779 = vmatprep.subr.bf16.mxu0 0
      %780 = vmatpush1.bf16.msra.mxu0 0
      %781 = vmatprep.subr.bf16.mxu0 0
      %782 = vmatpush1.bf16.msra.mxu0 0
      %783 = vmatprep.subr.bf16.mxu0 0
      %784 = vmatpush1.bf16.msra.mxu0 0
      %785 = vmatprep.subr.bf16.mxu0 0
      %786 = vmatpush1.bf16.msra.mxu0 0
      %787 = vmatprep.subr.bf16.mxu0 0
      %788 = vmatpush1.bf16.msra.mxu0 0
      %789 = vmatprep.subr.bf16.mxu0 0
      %790 = vmatpush1.bf16.msra.mxu0 0
      %791 = vmatprep.subr.bf16.mxu0 0
      %792 = vmatpush1.bf16.msra.mxu0 0
      %793 = vmatprep.mubr.bf16.mxu0 0
      %794 = vmatmul.mubr.bf16.gmra.mrb[0].mxu0 %v759
      %v795 = vpop.f32.mrb[0].mxu0
      %v796 = vadd.f32 %v712, %v795
      %v797 = vpop.f32.mrb[0].mxu0
      %v798 = vadd.f32 %v714, %v797
      %v799 = vpop.f32.mrb[0].mxu0
      %v800 = vpop.f32.mrb[0].mxu0
      %801 = vdwg.mxu0
      %v803 = vlaneseq
      %v804 = vshrl.u32 %v803, 7
      %v805 = vsub.s32 0, %v804
      %v806 = vrot.slane %v114, %v805
      %v807 = vlaneseq
      %v808 = vshrl.u32 %v807, 7
      %v809 = vsub.s32 1, %v808
      %v810 = vrot.slane %v114, %v809
      %v813 = vadd.f32 %v796, %v806
      %v814 = vadd.f32 %v798, %v810
      %v815 = vxor.u32 %v813, 2147483648
      %v816 = vxor.u32 %v814, 2147483648
      %v817 = vmul.f32 %v815, 1.442695
      %v818 = vpow.pop %v817
      %v819 = vmul.f32 %v816, 1.442695
      %v820 = vpow.pop %v819
      %v821 = vadd.f32 %v818, 1.0
      %v822 = vadd.f32 %v820, 1.0
      %v823 = vrcp.pop %v821
      %v824 = vmul.f32 1.0, %v823
      %v825 = vrcp.pop %v822
      %v826 = vmul.f32 1.0, %v825
      %v827 = vtanh.pop %v814
      %829 = vrot.lane.b32.xlu0 %v632, 64
      %v830 = vpop.permute.xlu0 %829
      %v832 = vmul.f32 %v824, %v830
      %834 = vrot.lane.b32.xlu0 %v827, 64
      %v835 = vpop.permute.xlu0 %834
      %v837 = vmul.f32 %v824, %v835
      %839 = vrot.lane.b32.xlu0 %v837, 64
      %v840 = vpop.permute.xlu0 %839
      %v842 = vadd.f32 %v832, %v840
      %v843 = vtanh.pop %v842
      %845 = vrot.lane.b32.xlu0 %v843, 64
      %v846 = vpop.permute.xlu0 %845
      %v848 = vmul.f32 %v826, %v846
      %849 = vst.msk [vmem:[#allocation2 + $0x4] sm:$0x3] %vm363, %v848
      %851 = vrot.lane.b32.xlu0 %v842, 64
      %v852 = vpop.permute.xlu0 %851
      %854 = vst.msk [vmem:[#allocation3 + $0x4] sm:$0x3] %vm363, %v852
      %v855 = vpack.c.bf16 %v848, %v848
      %v856 = vld [vmem:[#allocation13] sm:$0xf]
      %v857 = vld [vmem:[#allocation13 + $0x4] sm:$0xf]
      %v858 = vld [vmem:[#allocation13 + $0x8] sm:$0xf]
      %v859 = vld [vmem:[#allocation13 + $0xc] sm:$0xf]
      %v860 = vld [vmem:[#allocation13 + $0x10] sm:$0xf]
      %v861 = vld [vmem:[#allocation13 + $0x14] sm:$0xf]
      %v862 = vld [vmem:[#allocation13 + $0x18] sm:$0xf]
      %v863 = vld [vmem:[#allocation13 + $0x1c] sm:$0xf]
      %v865 = vlaneseq
      %v866 = vshrl.u32 %v865, 7
      %v867 = vsub.s32 0, %v866
      %v868 = vrot.slane %v115, %v867
      %v878 = vunpack.c.l.b16 %v856
      %v879 = vunpack.c.l.b16 %v857
      %v880 = vunpack.c.l.b16 %v858
      %v881 = vunpack.c.l.b16 %v859
      %v882 = vunpack.c.l.b16 %v860
      %v883 = vunpack.c.l.b16 %v861
      %v884 = vunpack.c.l.b16 %v862
      %v885 = vunpack.c.l.b16 %v863
      %v886 = vpack.c.b16 %v879, %v878
      %v887 = vpack.c.b16 %v881, %v880
      %v888 = vpack.c.b16 %v883, %v882
      %v889 = vpack.c.b16 %v885, %v884
      %v895 = vsel %vm187, %v855, 0
      %897 = vmatprep.subr.bf16.mxu0 0
      %898 = vmatpush1.bf16.msra.mxu0 %v886
      %899 = vmatprep.subr.bf16.mxu0 0
      %900 = vmatpush1.bf16.msra.mxu0 %v887
      %901 = vmatprep.subr.bf16.mxu0 0
      %902 = vmatpush1.bf16.msra.mxu0 %v888
      %903 = vmatprep.subr.bf16.mxu0 0
      %904 = vmatpush1.bf16.msra.mxu0 %v889
      %905 = vmatprep.subr.bf16.mxu0 0
      %906 = vmatpush1.bf16.msra.mxu0 0
      %907 = vmatprep.subr.bf16.mxu0 0
      %908 = vmatpush1.bf16.msra.mxu0 0
      %909 = vmatprep.subr.bf16.mxu0 0
      %910 = vmatpush1.bf16.msra.mxu0 0
      %911 = vmatprep.subr.bf16.mxu0 0
      %912 = vmatpush1.bf16.msra.mxu0 0
      %913 = vmatprep.subr.bf16.mxu0 0
      %914 = vmatpush1.bf16.msra.mxu0 0
      %915 = vmatprep.subr.bf16.mxu0 0
      %916 = vmatpush1.bf16.msra.mxu0 0
      %917 = vmatprep.subr.bf16.mxu0 0
      %918 = vmatpush1.bf16.msra.mxu0 0
      %919 = vmatprep.subr.bf16.mxu0 0
      %920 = vmatpush1.bf16.msra.mxu0 0
      %921 = vmatprep.subr.bf16.mxu0 0
      %922 = vmatpush1.bf16.msra.mxu0 0
      %923 = vmatprep.subr.bf16.mxu0 0
      %924 = vmatpush1.bf16.msra.mxu0 0
      %925 = vmatprep.subr.bf16.mxu0 0
      %926 = vmatpush1.bf16.msra.mxu0 0
      %927 = vmatprep.subr.bf16.mxu0 0
      %928 = vmatpush1.bf16.msra.mxu0 0
      %929 = vmatprep.mubr.bf16.mxu0 0
      %930 = vmatmul.mubr.bf16.gmra.mrb[0].mxu0 %v895
      %v931 = vpop.f32.mrb[0].mxu0
      %v932 = vadd.f32 %v868, %v931
      %v933 = vpop.f32.mrb[0].mxu0
      %v934 = vpop.f32.mrb[0].mxu0
      %v935 = vpop.f32.mrb[0].mxu0
      %936 = vdwg.mxu0
      %s937 = smul.u32 %s122, 2
      %s938 = scalar_lea.vmem [#allocation14], %s937
      %939 = vst.msk [vmem:[%s938] sm:$0x3] %vm363, %v932
      %v940 = vsel %vm363, %v932, -inf
      %941 = vmax.xlane.f32.xlu0 %v940
      %v942 = vpop.xlane.xlu0 %941
      %vm943 = vcmp.eq.f32.partialorder %v932, %v942
      %v944 = vsel %vm943, %v109, 64
      %v945 = vsel %vm363, %v944, 2147483647
      %v946 = vand.u32 %v945, 65535
      %v947 = vshra.s32 %v945, 16
      %v948 = vcvt.s32.f32 %v946
      %v949 = vcvt.s32.f32 %v947
      %950 = vmin.xlane.f32.xlu0 %v949
      %v951 = vpop.xlane.xlu0 %950
      %vm952 = vcmp.eq.f32.partialorder %v949, %v951
      %v953 = vsel %vm952, %v948, inf
      %954 = vmin.xlane.f32.xlu0 %v953
      %v955 = vpop.xlane.xlu0 %954
      %v956 = vcvt.f32.s32 %v955
      %v957 = vcvt.f32.s32 %v951
      %v958 = vshll.u32 %v957, 16
      %v959 = vadd.s32 %v958, %v956
      %vm960 = vcmp.eq.s32.totalorder %v109, %v959
      %v961 = vsel %vm960, 1.0, 0.0
      %v962 = vpack.c.bf16 %v961, %v961
      %963 = vst.msk [vmem:[#allocation4] sm:$0x1] %vm119, %v962
    $region58: #{tpu_custom_call.1} parent=1 // loop_footer
      %s126 = sadd.s32 1, %s122
    $region59: #{tpu_custom_call.1} parent=1 // loop_footer_branch
      %121 = sbr.rel target = $region55
    $region60: #{tpu_custom_call.1} parent=1 // loop_exit
      _
    %v964 = vld [vmem:[#allocation2] sm:$0x3f]
    %965 = vst.msk [vmem:[#allocation15] sm:$0x3f] %vm104, %v964
    %v966 = vld [vmem:[#allocation3] sm:$0x3f]
    %967 = vst.msk [vmem:[#allocation17] sm:$0x3f] %vm104, %v966
    %v968 = vld [vmem:[#allocation14] sm:$0x3]
    %v969 = vld [vmem:[#allocation14 + $0x2] sm:$0x3]
    %v970 = vld [vmem:[#allocation14 + $0x4] sm:$0x3]
    %v971 = vld [vmem:[#allocation14 + $0x6] sm:$0x3]
    %v972 = vld [vmem:[#allocation14 + $0x8] sm:$0x3]
    %v973 = vld [vmem:[#allocation14 + $0xa] sm:$0x3]
    %v974 = vld [vmem:[#allocation14 + $0xc] sm:$0x3]
    %v975 = vld [vmem:[#allocation14 + $0xe] sm:$0x3]
    %v976 = vld [vmem:[#allocation14 + $0x10] sm:$0x3]
    %v977 = vld [vmem:[#allocation14 + $0x12] sm:$0x3]
    %v978 = vld [vmem:[#allocation14 + $0x14] sm:$0x3]
    %v979 = vld [vmem:[#allocation14 + $0x16] sm:$0x3]
    %v980 = vld [vmem:[#allocation14 + $0x18] sm:$0x3]
    %v981 = vld [vmem:[#allocation14 + $0x1a] sm:$0x3]
    %v982 = vld [vmem:[#allocation14 + $0x1c] sm:$0x3]
    %v983 = vld [vmem:[#allocation14 + $0x1e] sm:$0x3]
    %v984 = vld [vmem:[#allocation14 + $0x20] sm:$0x3]
    %v985 = vld [vmem:[#allocation14 + $0x22] sm:$0x3]
    %v986 = vld [vmem:[#allocation14 + $0x24] sm:$0x3]
    %v987 = vld [vmem:[#allocation14 + $0x26] sm:$0x3]
    %v988 = vld [vmem:[#allocation14 + $0x28] sm:$0x3]
    %v989 = vld [vmem:[#allocation14 + $0x2a] sm:$0x3]
    %v990 = vld [vmem:[#allocation14 + $0x2c] sm:$0x3]
    %v991 = vld [vmem:[#allocation14 + $0x2e] sm:$0x3]
    %v992 = vld [vmem:[#allocation14 + $0x30] sm:$0x3]
    %v993 = vld [vmem:[#allocation14 + $0x32] sm:$0x3]
    %v994 = vld [vmem:[#allocation14 + $0x34] sm:$0x3]
    %v995 = vld [vmem:[#allocation14 + $0x36] sm:$0x3]
    %v996 = vld [vmem:[#allocation14 + $0x38] sm:$0x3]
    %v997 = vld [vmem:[#allocation14 + $0x3a] sm:$0x3]
    %v998 = vld [vmem:[#allocation14 + $0x3c] sm:$0x3]
    %vm999 = vcmask 517120
    %v1000 = vsel %vm999, %v968, -inf
    %1001 = vmax.xlane.f32.xlu0 %v1000
    %v1002 = vpop.xlane.xlu0 %1001
    %v1003 = vsel %vm999, %v969, -inf
    %1004 = vmax.xlane.f32.xlu0 %v1003
    %v1005 = vpop.xlane.xlu0 %1004
    %v1006 = vsel %vm999, %v970, -inf
    %1007 = vmax.xlane.f32.xlu0 %v1006
    %v1008 = vpop.xlane.xlu0 %1007
    %v1009 = vsel %vm999, %v971, -inf
    %1010 = vmax.xlane.f32.xlu0 %v1009
    %v1011 = vpop.xlane.xlu0 %1010
    %v1012 = vsel %vm999, %v972, -inf
    %1013 = vmax.xlane.f32.xlu0 %v1012
    %v1014 = vpop.xlane.xlu0 %1013
    %v1015 = vsel %vm999, %v973, -inf
    %1016 = vmax.xlane.f32.xlu0 %v1015
    %v1017 = vpop.xlane.xlu0 %1016
    %v1018 = vsel %vm999, %v974, -inf
    %1019 = vmax.xlane.f32.xlu0 %v1018
    %v1020 = vpop.xlane.xlu0 %1019
    %v1021 = vsel %vm999, %v975, -inf
    %1022 = vmax.xlane.f32.xlu0 %v1021
    %v1023 = vpop.xlane.xlu0 %1022
    %v1024 = vsel %vm999, %v976, -inf
    %1025 = vmax.xlane.f32.xlu0 %v1024
    %v1026 = vpop.xlane.xlu0 %1025
    %v1027 = vsel %vm999, %v977, -inf
    %1028 = vmax.xlane.f32.xlu0 %v1027
    %v1029 = vpop.xlane.xlu0 %1028
    %v1030 = vsel %vm999, %v978, -inf
    %1031 = vmax.xlane.f32.xlu0 %v1030
    %v1032 = vpop.xlane.xlu0 %1031
    %v1033 = vsel %vm999, %v979, -inf
    %1034 = vmax.xlane.f32.xlu0 %v1033
    %v1035 = vpop.xlane.xlu0 %1034
    %v1036 = vsel %vm999, %v980, -inf
    %1037 = vmax.xlane.f32.xlu0 %v1036
    %v1038 = vpop.xlane.xlu0 %1037
    %v1039 = vsel %vm999, %v981, -inf
    %1040 = vmax.xlane.f32.xlu0 %v1039
    %v1041 = vpop.xlane.xlu0 %1040
    %v1042 = vsel %vm999, %v982, -inf
    %1043 = vmax.xlane.f32.xlu0 %v1042
    %v1044 = vpop.xlane.xlu0 %1043
    %v1045 = vsel %vm999, %v983, -inf
    %1046 = vmax.xlane.f32.xlu0 %v1045
    %v1047 = vpop.xlane.xlu0 %1046
    %v1048 = vsel %vm999, %v984, -inf
    %1049 = vmax.xlane.f32.xlu0 %v1048
    %v1050 = vpop.xlane.xlu0 %1049
    %v1051 = vsel %vm999, %v985, -inf
    %1052 = vmax.xlane.f32.xlu0 %v1051
    %v1053 = vpop.xlane.xlu0 %1052
    %v1054 = vsel %vm999, %v986, -inf
    %1055 = vmax.xlane.f32.xlu0 %v1054
    %v1056 = vpop.xlane.xlu0 %1055
    %v1057 = vsel %vm999, %v987, -inf
    %1058 = vmax.xlane.f32.xlu0 %v1057
    %v1059 = vpop.xlane.xlu0 %1058
    %v1060 = vsel %vm999, %v988, -inf
    %1061 = vmax.xlane.f32.xlu0 %v1060
    %v1062 = vpop.xlane.xlu0 %1061
    %v1063 = vsel %vm999, %v989, -inf
    %1064 = vmax.xlane.f32.xlu0 %v1063
    %v1065 = vpop.xlane.xlu0 %1064
    %v1066 = vsel %vm999, %v990, -inf
    %1067 = vmax.xlane.f32.xlu0 %v1066
    %v1068 = vpop.xlane.xlu0 %1067
    %v1069 = vsel %vm999, %v991, -inf
    %1070 = vmax.xlane.f32.xlu0 %v1069
    %v1071 = vpop.xlane.xlu0 %1070
    %v1072 = vsel %vm999, %v992, -inf
    %1073 = vmax.xlane.f32.xlu0 %v1072
    %v1074 = vpop.xlane.xlu0 %1073
    %v1075 = vsel %vm999, %v993, -inf
    %1076 = vmax.xlane.f32.xlu0 %v1075
    %v1077 = vpop.xlane.xlu0 %1076
    %v1078 = vsel %vm999, %v994, -inf
    %1079 = vmax.xlane.f32.xlu0 %v1078
    %v1080 = vpop.xlane.xlu0 %1079
    %v1081 = vsel %vm999, %v995, -inf
    %1082 = vmax.xlane.f32.xlu0 %v1081
    %v1083 = vpop.xlane.xlu0 %1082
    %v1084 = vsel %vm999, %v996, -inf
    %1085 = vmax.xlane.f32.xlu0 %v1084
    %v1086 = vpop.xlane.xlu0 %1085
    %v1087 = vsel %vm999, %v997, -inf
    %1088 = vmax.xlane.f32.xlu0 %v1087
    %v1089 = vpop.xlane.xlu0 %1088
    %v1090 = vsel %vm999, %v998, -inf
    %1091 = vmax.xlane.f32.xlu0 %v1090
    %v1092 = vpop.xlane.xlu0 %1091
    %v1093 = vsub.f32 %v968, %v1002
    %v1094 = vsub.f32 %v969, %v1005
    %v1095 = vsub.f32 %v970, %v1008
    %v1096 = vsub.f32 %v971, %v1011
    %v1097 = vsub.f32 %v972, %v1014
    %v1098 = vsub.f32 %v973, %v1017
    %v1099 = vsub.f32 %v974, %v1020
    %v1100 = vsub.f32 %v975, %v1023
    %v1101 = vsub.f32 %v976, %v1026
    %v1102 = vsub.f32 %v977, %v1029
    %v1103 = vsub.f32 %v978, %v1032
    %v1104 = vsub.f32 %v979, %v1035
    %v1105 = vsub.f32 %v980, %v1038
    %v1106 = vsub.f32 %v981, %v1041
    %v1107 = vsub.f32 %v982, %v1044
    %v1108 = vsub.f32 %v983, %v1047
    %v1109 = vsub.f32 %v984, %v1050
    %v1110 = vsub.f32 %v985, %v1053
    %v1111 = vsub.f32 %v986, %v1056
    %v1112 = vsub.f32 %v987, %v1059
    %v1113 = vsub.f32 %v988, %v1062
    %v1114 = vsub.f32 %v989, %v1065
    %v1115 = vsub.f32 %v990, %v1068
    %v1116 = vsub.f32 %v991, %v1071
    %v1117 = vsub.f32 %v992, %v1074
    %v1118 = vsub.f32 %v993, %v1077
    %v1119 = vsub.f32 %v994, %v1080
    %v1120 = vsub.f32 %v995, %v1083
    %v1121 = vsub.f32 %v996, %v1086
    %v1122 = vsub.f32 %v997, %v1089
    %v1123 = vsub.f32 %v998, %v1092
    %v1124 = vmul.f32 %v1093, 1.442695
    %v1125 = vpow.pop %v1124
    %v1126 = vmul.f32 %v1094, 1.442695
    %v1127 = vpow.pop %v1126
    %v1128 = vmul.f32 %v1095, 1.442695
    %v1129 = vpow.pop %v1128
    %v1130 = vmul.f32 %v1096, 1.442695
    %v1131 = vpow.pop %v1130
    %v1132 = vmul.f32 %v1097, 1.442695
    %v1133 = vpow.pop %v1132
    %v1134 = vmul.f32 %v1098, 1.442695
    %v1135 = vpow.pop %v1134
    %v1136 = vmul.f32 %v1099, 1.442695
    %v1137 = vpow.pop %v1136
    %v1138 = vmul.f32 %v1100, 1.442695
    %v1139 = vpow.pop %v1138
    %v1140 = vmul.f32 %v1101, 1.442695
    %v1141 = vpow.pop %v1140
    %v1142 = vmul.f32 %v1102, 1.442695
    %v1143 = vpow.pop %v1142
    %v1144 = vmul.f32 %v1103, 1.442695
    %v1145 = vpow.pop %v1144
    %v1146 = vmul.f32 %v1104, 1.442695
    %v1147 = vpow.pop %v1146
    %v1148 = vmul.f32 %v1105, 1.442695
    %v1149 = vpow.pop %v1148
    %v1150 = vmul.f32 %v1106, 1.442695
    %v1151 = vpow.pop %v1150
    %v1152 = vmul.f32 %v1107, 1.442695
    %v1153 = vpow.pop %v1152
    %v1154 = vmul.f32 %v1108, 1.442695
    %v1155 = vpow.pop %v1154
    %v1156 = vmul.f32 %v1109, 1.442695
    %v1157 = vpow.pop %v1156
    %v1158 = vmul.f32 %v1110, 1.442695
    %v1159 = vpow.pop %v1158
    %v1160 = vmul.f32 %v1111, 1.442695
    %v1161 = vpow.pop %v1160
    %v1162 = vmul.f32 %v1112, 1.442695
    %v1163 = vpow.pop %v1162
    %v1164 = vmul.f32 %v1113, 1.442695
    %v1165 = vpow.pop %v1164
    %v1166 = vmul.f32 %v1114, 1.442695
    %v1167 = vpow.pop %v1166
    %v1168 = vmul.f32 %v1115, 1.442695
    %v1169 = vpow.pop %v1168
    %v1170 = vmul.f32 %v1116, 1.442695
    %v1171 = vpow.pop %v1170
    %v1172 = vmul.f32 %v1117, 1.442695
    %v1173 = vpow.pop %v1172
    %v1174 = vmul.f32 %v1118, 1.442695
    %v1175 = vpow.pop %v1174
    %v1176 = vmul.f32 %v1119, 1.442695
    %v1177 = vpow.pop %v1176
    %v1178 = vmul.f32 %v1120, 1.442695
    %v1179 = vpow.pop %v1178
    %v1180 = vmul.f32 %v1121, 1.442695
    %v1181 = vpow.pop %v1180
    %v1182 = vmul.f32 %v1122, 1.442695
    %v1183 = vpow.pop %v1182
    %v1184 = vmul.f32 %v1123, 1.442695
    %v1185 = vpow.pop %v1184
    %v1186 = vsel %vm999, %v1125, 0.0
    %1187 = vadd.xlane.f32.xlu0 %v1186
    %v1188 = vpop.xlane.xlu0 %1187
    %v1189 = vsel %vm999, %v1127, 0.0
    %1190 = vadd.xlane.f32.xlu0 %v1189
    %v1191 = vpop.xlane.xlu0 %1190
    %v1192 = vsel %vm999, %v1129, 0.0
    %1193 = vadd.xlane.f32.xlu0 %v1192
    %v1194 = vpop.xlane.xlu0 %1193
    %v1195 = vsel %vm999, %v1131, 0.0
    %1196 = vadd.xlane.f32.xlu0 %v1195
    %v1197 = vpop.xlane.xlu0 %1196
    %v1198 = vsel %vm999, %v1133, 0.0
    %1199 = vadd.xlane.f32.xlu0 %v1198
    %v1200 = vpop.xlane.xlu0 %1199
    %v1201 = vsel %vm999, %v1135, 0.0
    %1202 = vadd.xlane.f32.xlu0 %v1201
    %v1203 = vpop.xlane.xlu0 %1202
    %v1204 = vsel %vm999, %v1137, 0.0
    %1205 = vadd.xlane.f32.xlu0 %v1204
    %v1206 = vpop.xlane.xlu0 %1205
    %v1207 = vsel %vm999, %v1139, 0.0
    %1208 = vadd.xlane.f32.xlu0 %v1207
    %v1209 = vpop.xlane.xlu0 %1208
    %v1210 = vsel %vm999, %v1141, 0.0
    %1211 = vadd.xlane.f32.xlu0 %v1210
    %v1212 = vpop.xlane.xlu0 %1211
    %v1213 = vsel %vm999, %v1143, 0.0
    %1214 = vadd.xlane.f32.xlu0 %v1213
    %v1215 = vpop.xlane.xlu0 %1214
    %v1216 = vsel %vm999, %v1145, 0.0
    %1217 = vadd.xlane.f32.xlu0 %v1216
    %v1218 = vpop.xlane.xlu0 %1217
    %v1219 = vsel %vm999, %v1147, 0.0
    %1220 = vadd.xlane.f32.xlu0 %v1219
    %v1221 = vpop.xlane.xlu0 %1220
    %v1222 = vsel %vm999, %v1149, 0.0
    %1223 = vadd.xlane.f32.xlu0 %v1222
    %v1224 = vpop.xlane.xlu0 %1223
    %v1225 = vsel %vm999, %v1151, 0.0
    %1226 = vadd.xlane.f32.xlu0 %v1225
    %v1227 = vpop.xlane.xlu0 %1226
    %v1228 = vsel %vm999, %v1153, 0.0
    %1229 = vadd.xlane.f32.xlu0 %v1228
    %v1230 = vpop.xlane.xlu0 %1229
    %v1231 = vsel %vm999, %v1155, 0.0
    %1232 = vadd.xlane.f32.xlu0 %v1231
    %v1233 = vpop.xlane.xlu0 %1232
    %v1234 = vsel %vm999, %v1157, 0.0
    %1235 = vadd.xlane.f32.xlu0 %v1234
    %v1236 = vpop.xlane.xlu0 %1235
    %v1237 = vsel %vm999, %v1159, 0.0
    %1238 = vadd.xlane.f32.xlu0 %v1237
    %v1239 = vpop.xlane.xlu0 %1238
    %v1240 = vsel %vm999, %v1161, 0.0
    %1241 = vadd.xlane.f32.xlu0 %v1240
    %v1242 = vpop.xlane.xlu0 %1241
    %v1243 = vsel %vm999, %v1163, 0.0
    %1244 = vadd.xlane.f32.xlu0 %v1243
    %v1245 = vpop.xlane.xlu0 %1244
    %v1246 = vsel %vm999, %v1165, 0.0
    %1247 = vadd.xlane.f32.xlu0 %v1246
    %v1248 = vpop.xlane.xlu0 %1247
    %v1249 = vsel %vm999, %v1167, 0.0
    %1250 = vadd.xlane.f32.xlu0 %v1249
    %v1251 = vpop.xlane.xlu0 %1250
    %v1252 = vsel %vm999, %v1169, 0.0
    %1253 = vadd.xlane.f32.xlu0 %v1252
    %v1254 = vpop.xlane.xlu0 %1253
    %v1255 = vsel %vm999, %v1171, 0.0
    %1256 = vadd.xlane.f32.xlu0 %v1255
    %v1257 = vpop.xlane.xlu0 %1256
    %v1258 = vsel %vm999, %v1173, 0.0
    %1259 = vadd.xlane.f32.xlu0 %v1258
    %v1260 = vpop.xlane.xlu0 %1259
    %v1261 = vsel %vm999, %v1175, 0.0
    %1262 = vadd.xlane.f32.xlu0 %v1261
    %v1263 = vpop.xlane.xlu0 %1262
    %v1264 = vsel %vm999, %v1177, 0.0
    %1265 = vadd.xlane.f32.xlu0 %v1264
    %v1266 = vpop.xlane.xlu0 %1265
    %v1267 = vsel %vm999, %v1179, 0.0
    %1268 = vadd.xlane.f32.xlu0 %v1267
    %v1269 = vpop.xlane.xlu0 %1268
    %v1270 = vsel %vm999, %v1181, 0.0
    %1271 = vadd.xlane.f32.xlu0 %v1270
    %v1272 = vpop.xlane.xlu0 %1271
    %v1273 = vsel %vm999, %v1183, 0.0
    %1274 = vadd.xlane.f32.xlu0 %v1273
    %v1275 = vpop.xlane.xlu0 %1274
    %v1276 = vsel %vm999, %v1185, 0.0
    %1277 = vadd.xlane.f32.xlu0 %v1276
    %v1278 = vpop.xlane.xlu0 %1277
    %v1279 = vlog2.pop %v1188
    %v1280 = vmul.f32 %v1279, 0.6931472
    %v1281 = vlog2.pop %v1191
    %v1282 = vmul.f32 %v1281, 0.6931472
    %v1283 = vlog2.pop %v1194
    %v1284 = vmul.f32 %v1283, 0.6931472
    %v1285 = vlog2.pop %v1197
    %v1286 = vmul.f32 %v1285, 0.6931472
    %v1287 = vlog2.pop %v1200
    %v1288 = vmul.f32 %v1287, 0.6931472
    %v1289 = vlog2.pop %v1203
    %v1290 = vmul.f32 %v1289, 0.6931472
    %v1291 = vlog2.pop %v1206
    %v1292 = vmul.f32 %v1291, 0.6931472
    %v1293 = vlog2.pop %v1209
    %v1294 = vmul.f32 %v1293, 0.6931472
    %v1295 = vlog2.pop %v1212
    %v1296 = vmul.f32 %v1295, 0.6931472
    %v1297 = vlog2.pop %v1215
    %v1298 = vmul.f32 %v1297, 0.6931472
    %v1299 = vlog2.pop %v1218
    %v1300 = vmul.f32 %v1299, 0.6931472
    %v1301 = vlog2.pop %v1221
    %v1302 = vmul.f32 %v1301, 0.6931472
    %v1303 = vlog2.pop %v1224
    %v1304 = vmul.f32 %v1303, 0.6931472
    %v1305 = vlog2.pop %v1227
    %v1306 = vmul.f32 %v1305, 0.6931472
    %v1307 = vlog2.pop %v1230
    %v1308 = vmul.f32 %v1307, 0.6931472
    %v1309 = vlog2.pop %v1233
    %v1310 = vmul.f32 %v1309, 0.6931472
    %v1311 = vlog2.pop %v1236
    %v1312 = vmul.f32 %v1311, 0.6931472
    %v1313 = vlog2.pop %v1239
    %v1314 = vmul.f32 %v1313, 0.6931472
    %v1315 = vlog2.pop %v1242
    %v1316 = vmul.f32 %v1315, 0.6931472
    %v1317 = vlog2.pop %v1245
    %v1318 = vmul.f32 %v1317, 0.6931472
    %v1319 = vlog2.pop %v1248
    %v1320 = vmul.f32 %v1319, 0.6931472
    %v1321 = vlog2.pop %v1251
    %v1322 = vmul.f32 %v1321, 0.6931472
    %v1323 = vlog2.pop %v1254
    %v1324 = vmul.f32 %v1323, 0.6931472
    %v1325 = vlog2.pop %v1257
    %v1326 = vmul.f32 %v1325, 0.6931472
    %v1327 = vlog2.pop %v1260
    %v1328 = vmul.f32 %v1327, 0.6931472
    %v1329 = vlog2.pop %v1263
    %v1330 = vmul.f32 %v1329, 0.6931472
    %v1331 = vlog2.pop %v1266
    %v1332 = vmul.f32 %v1331, 0.6931472
    %v1333 = vlog2.pop %v1269
    %v1334 = vmul.f32 %v1333, 0.6931472
    %v1335 = vlog2.pop %v1272
    %v1336 = vmul.f32 %v1335, 0.6931472
    %v1337 = vlog2.pop %v1275
    %v1338 = vmul.f32 %v1337, 0.6931472
    %v1339 = vlog2.pop %v1278
    %v1340 = vmul.f32 %v1339, 0.6931472
    %v1341 = vsub.f32 %v1093, %v1280
    %v1342 = vsub.f32 %v1094, %v1282
    %v1343 = vsub.f32 %v1095, %v1284
    %v1344 = vsub.f32 %v1096, %v1286
    %v1345 = vsub.f32 %v1097, %v1288
    %v1346 = vsub.f32 %v1098, %v1290
    %v1347 = vsub.f32 %v1099, %v1292
    %v1348 = vsub.f32 %v1100, %v1294
    %v1349 = vsub.f32 %v1101, %v1296
    %v1350 = vsub.f32 %v1102, %v1298
    %v1351 = vsub.f32 %v1103, %v1300
    %v1352 = vsub.f32 %v1104, %v1302
    %v1353 = vsub.f32 %v1105, %v1304
    %v1354 = vsub.f32 %v1106, %v1306
    %v1355 = vsub.f32 %v1107, %v1308
    %v1356 = vsub.f32 %v1108, %v1310
    %v1357 = vsub.f32 %v1109, %v1312
    %v1358 = vsub.f32 %v1110, %v1314
    %v1359 = vsub.f32 %v1111, %v1316
    %v1360 = vsub.f32 %v1112, %v1318
    %v1361 = vsub.f32 %v1113, %v1320
    %v1362 = vsub.f32 %v1114, %v1322
    %v1363 = vsub.f32 %v1115, %v1324
    %v1364 = vsub.f32 %v1116, %v1326
    %v1365 = vsub.f32 %v1117, %v1328
    %v1366 = vsub.f32 %v1118, %v1330
    %v1367 = vsub.f32 %v1119, %v1332
    %v1368 = vsub.f32 %v1120, %v1334
    %v1369 = vsub.f32 %v1121, %v1336
    %v1370 = vsub.f32 %v1122, %v1338
    %v1371 = vsub.f32 %v1123, %v1340
    %1372 = vst.msk [vmem:[#allocation14] sm:$0x3] %vm999, %v1341
    %1373 = vst.msk [vmem:[#allocation14 + $0x2] sm:$0x3] %vm999, %v1342
    %1374 = vst.msk [vmem:[#allocation14 + $0x4] sm:$0x3] %vm999, %v1343
    %1375 = vst.msk [vmem:[#allocation14 + $0x6] sm:$0x3] %vm999, %v1344
    %1376 = vst.msk [vmem:[#allocation14 + $0x8] sm:$0x3] %vm999, %v1345
    %1377 = vst.msk [vmem:[#allocation14 + $0xa] sm:$0x3] %vm999, %v1346
    %1378 = vst.msk [vmem:[#allocation14 + $0xc] sm:$0x3] %vm999, %v1347
    %1379 = vst.msk [vmem:[#allocation14 + $0xe] sm:$0x3] %vm999, %v1348
    %1380 = vst.msk [vmem:[#allocation14 + $0x10] sm:$0x3] %vm999, %v1349
    %1381 = vst.msk [vmem:[#allocation14 + $0x12] sm:$0x3] %vm999, %v1350
    %1382 = vst.msk [vmem:[#allocation14 + $0x14] sm:$0x3] %vm999, %v1351
    %1383 = vst.msk [vmem:[#allocation14 + $0x16] sm:$0x3] %vm999, %v1352
    %1384 = vst.msk [vmem:[#allocation14 + $0x18] sm:$0x3] %vm999, %v1353
    %1385 = vst.msk [vmem:[#allocation14 + $0x1a] sm:$0x3] %vm999, %v1354
    %1386 = vst.msk [vmem:[#allocation14 + $0x1c] sm:$0x3] %vm999, %v1355
    %1387 = vst.msk [vmem:[#allocation14 + $0x1e] sm:$0x3] %vm999, %v1356
    %1388 = vst.msk [vmem:[#allocation14 + $0x20] sm:$0x3] %vm999, %v1357
    %1389 = vst.msk [vmem:[#allocation14 + $0x22] sm:$0x3] %vm999, %v1358
    %1390 = vst.msk [vmem:[#allocation14 + $0x24] sm:$0x3] %vm999, %v1359
    %1391 = vst.msk [vmem:[#allocation14 + $0x26] sm:$0x3] %vm999, %v1360
    %1392 = vst.msk [vmem:[#allocation14 + $0x28] sm:$0x3] %vm999, %v1361
    %1393 = vst.msk [vmem:[#allocation14 + $0x2a] sm:$0x3] %vm999, %v1362
    %1394 = vst.msk [vmem:[#allocation14 + $0x2c] sm:$0x3] %vm999, %v1363
    %1395 = vst.msk [vmem:[#allocation14 + $0x2e] sm:$0x3] %vm999, %v1364
    %1396 = vst.msk [vmem:[#allocation14 + $0x30] sm:$0x3] %vm999, %v1365
    %1397 = vst.msk [vmem:[#allocation14 + $0x32] sm:$0x3] %vm999, %v1366
    %1398 = vst.msk [vmem:[#allocation14 + $0x34] sm:$0x3] %vm999, %v1367
    %1399 = vst.msk [vmem:[#allocation14 + $0x36] sm:$0x3] %vm999, %v1368
    %1400 = vst.msk [vmem:[#allocation14 + $0x38] sm:$0x3] %vm999, %v1369
    %1401 = vst.msk [vmem:[#allocation14 + $0x3a] sm:$0x3] %vm999, %v1370
    %1402 = vst.msk [vmem:[#allocation14 + $0x3c] sm:$0x3] %vm999, %v1371
    // Predicated region
    $region61: #{tpu_custom_call.1} parent=1 // pred_check
      _
    $region62: #{tpu_custom_call.1} parent=1 // pred_check_branch
      %1404 = sbr.rel (0) target = $region64
    $region63: #{tpu_custom_call.1} parent=1 // pred_region
      %s1406 = ssub.s32 992, 992
      %1407 = vsyncadd [#allocation7], %s1406
      %s1408 = sshll.u32 [#allocation14], 4
      %s1409 = int_to_ptr.vmem [resolvable:$true] %s1408
      %1414 = dma.vmem_to_hbm [thread:$0]  %s1409, 992, %s8, [#allocation7], 32, 32, 2
    $region64: #{tpu_custom_call.1} parent=1 // pred_fallthru
      _
    // Predicated region
    $region65: #{tpu_custom_call.1} parent=1 // pred_check
      _
    $region66: #{tpu_custom_call.1} parent=1 // pred_check_branch
      %1416 = sbr.rel (0) target = $region68
    $region67: #{tpu_custom_call.1} parent=1 // pred_region
      %s1418 = ssub.s32 128, 128
      %1419 = vsyncadd [#allocation16], %s1418
      %s1421 = sshll.u32 [#allocation15], 4
      %s1422 = int_to_ptr.vmem [resolvable:$true] %s1421
      %1424 = dma.vmem_to_hbm [thread:$0]  %s1422, 128, %s9, [#allocation16]
    $region68: #{tpu_custom_call.1} parent=1 // pred_fallthru
      _
    // Predicated region
    $region69: #{tpu_custom_call.1} parent=1 // pred_check
      _
    $region70: #{tpu_custom_call.1} parent=1 // pred_check_branch
      %1426 = sbr.rel (0) target = $region72
    $region71: #{tpu_custom_call.1} parent=1 // pred_region
      %s1428 = ssub.s32 128, 128
      %1429 = vsyncadd [#allocation16], %s1428
      %s1431 = sshll.u32 [#allocation17], 4
      %s1432 = int_to_ptr.vmem [resolvable:$true] %s1431
      %1434 = dma.vmem_to_hbm [thread:$0]  %s1432, 128, %s10, [#allocation16]
    $region72: #{tpu_custom_call.1} parent=1 // pred_fallthru
      _
    // Predicated region
    $region73: #{tpu_custom_call.1} parent=1 // pred_check
      _
    $region74: #{tpu_custom_call.1} parent=1 // pred_check_branch
      %1436 = sbr.rel (0) target = $region76
    $region75: #{tpu_custom_call.1} parent=1 // pred_region
      %1437 = dma.done [#allocation7], 992
    $region76: #{tpu_custom_call.1} parent=1 // pred_fallthru
      _
    // Predicated region
    $region77: #{tpu_custom_call.1} parent=1 // pred_check
      _
    $region78: #{tpu_custom_call.1} parent=1 // pred_check_branch
      %1439 = sbr.rel (0) target = $region80
    $region79: #{tpu_custom_call.1} parent=1 // pred_region
      %1440 = dma.done [#allocation16], 128
    $region80: #{tpu_custom_call.1} parent=1 // pred_fallthru
      _
    // Predicated region
    $region81: #{tpu_custom_call.1} parent=1 // pred_check
      _
    $region82: #{tpu_custom_call.1} parent=1 // pred_check_branch
      %1442 = sbr.rel (0) target = $region84
    $region83: #{tpu_custom_call.1} parent=1 // pred_region
      %1443 = dma.done [#allocation16], 128
    $region84: #{tpu_custom_call.1} parent=1 // pred_fallthru
      _
    %1444 = vsyncpa [#allocation6], 1
    %1445 = vsyncpa [#allocation9], 1
    %1446 = vsyncpa [#allocation12], 1
    %1447 = vsyncpa [#allocation7], 1
    %1448 = vsyncpa [#allocation16], 1

</llo_original>
